<compile_context>
chip_gen: v7x
topology: tpu7x:2x2x1
jax: 0.10.0
libtpu: 0.0.40
codegen_flags: <defaults>
</compile_context>

<pallas_src>
import functools

import jax
import jax.numpy as jnp
from jax import lax
from jax.experimental import pallas as pl
from jax.experimental.pallas import tpu as pltpu


def _round_up(x, m):
    return ((x + m - 1) // m) * m


def _pick_time_chunk(T, max_chunk=128):
    tc = min(T, max_chunk)
    while T % tc:
        tc -= 1
    return tc


# ----------------------------------------------------------------------------
# Tiled matmul + bias kernel (used for the hoisted input projection and the FC)
# ----------------------------------------------------------------------------
def _matmul_bias_kernel(x_ref, w_ref, b_ref, o_ref, acc_ref):
    k = pl.program_id(2)

    @pl.when(k == 0)
    def _():
        acc_ref[...] = jnp.zeros_like(acc_ref)

    acc_ref[...] += jnp.dot(x_ref[...], w_ref[...],
                            preferred_element_type=jnp.float32)

    @pl.when(k == pl.num_programs(2) - 1)
    def _():
        o_ref[...] = acc_ref[...] + b_ref[...]


def matmul_bias_pallas(x, w, b_row, *, tm=256, tn=512, tk=512):
    """(M,K) @ (K,N) + (1,N) -> (M,N) f32. bf16 operands, f32 accumulation."""
    M, K = x.shape
    Kw, N = w.shape
    assert K == Kw
    tm = min(tm, _round_up(M, 8))
    tn = min(tn, _round_up(N, 128))
    tk = min(tk, _round_up(K, 128))
    Mp, Kp, Np = _round_up(M, tm), _round_up(K, tk), _round_up(N, tn)

    xp = jnp.pad(x, ((0, Mp - M), (0, Kp - K))).astype(jnp.bfloat16)
    wp = jnp.pad(w, ((0, Kp - K), (0, Np - N))).astype(jnp.bfloat16)
    bp = jnp.pad(b_row.astype(jnp.float32), ((0, 0), (0, Np - N)))

    out = pl.pallas_call(
        _matmul_bias_kernel,
        out_shape=jax.ShapeDtypeStruct((Mp, Np), jnp.float32),
        grid_spec=pltpu.PrefetchScalarGridSpec(
            num_scalar_prefetch=0,
            grid=(Mp // tm, Np // tn, Kp // tk),
            in_specs=[
                pl.BlockSpec((tm, tk), lambda i, j, k: (i, k)),
                pl.BlockSpec((tk, tn), lambda i, j, k: (k, j)),
                pl.BlockSpec((1, tn), lambda i, j, k: (0, j)),
            ],
            out_specs=pl.BlockSpec((tm, tn), lambda i, j, k: (i, j)),
            scratch_shapes=[pltpu.VMEM((tm, tn), jnp.float32)],
        ),
        compiler_params=pltpu.CompilerParams(
            dimension_semantics=("parallel", "parallel", "arbitrary")),
    )(xp, wp, bp)
    return out[:M, :N]


# ----------------------------------------------------------------------------
# Sequential LSTM recurrence (input projection already hoisted out)
# ----------------------------------------------------------------------------
def _lstm_recurrent_kernel(gx_ref, w_hh_ref, seq_ref, h_out_ref, c_out_ref,
                           h_scr, c_scr, *, hidden_dim, t_chunk):
    """One time-chunk per grid step; in-kernel loop over t_chunk timesteps.

    PyTorch nn.LSTM cell, gate order (i, f, g, o):
        gates = gates_x[t] + h @ W_hh^T        (bias already folded into gates_x)
        c' = sigmoid(f)*c + sigmoid(i)*tanh(g) ;  h' = sigmoid(o)*tanh(c')
    """
    chunk = pl.program_id(0)

    @pl.when(chunk == 0)
    def _():  # hidden=None -> zero initial state
        h_scr[...] = jnp.zeros_like(h_scr)
        c_scr[...] = jnp.zeros_like(c_scr)

    H = hidden_dim
    w_hh = w_hh_ref[...]                      # (H, 4H) bf16, VMEM-resident

    def step(t, carry):
        h, c = carry                          # f32 (B, H), carried in vregs
        gates = gx_ref[t] + jnp.dot(h.astype(jnp.bfloat16), w_hh,
                                    preferred_element_type=jnp.float32)
        i_g = jax.nn.sigmoid(gates[:, 0 * H:1 * H])
        f_g = jax.nn.sigmoid(gates[:, 1 * H:2 * H])
        g_g = jnp.tanh(gates[:, 2 * H:3 * H])
        o_g = jax.nn.sigmoid(gates[:, 3 * H:4 * H])
        c_new = f_g * c + i_g * g_g
        h_new = o_g * jnp.tanh(c_new)
        seq_ref[t] = h_new                    # single (B, H) store per step
        return h_new, c_new

    unroll = True if t_chunk <= 32 else 8
    h_f, c_f = lax.fori_loop(0, t_chunk, step, (h_scr[...], c_scr[...]),
                             unroll=unroll)

    # Persist state only at chunk boundaries (not per timestep).
    h_scr[...] = h_f
    c_scr[...] = c_f

    @pl.when(chunk == pl.num_programs(0) - 1)
    def _():  # final-state outputs written exactly once
        h_out_ref[...] = h_f
        c_out_ref[...] = c_f


def lstm_recurrent_pallas(gates_x, w_hh_t_bf16, hidden_dim):
    """gates_x: (T, Bp, 4H) f32; w_hh_t_bf16: (H, 4H) bf16."""
    T, Bp, G = gates_x.shape
    H = hidden_dim
    assert G == 4 * H
    t_chunk = _pick_time_chunk(T)
    n_chunks = T // t_chunk
    kernel = functools.partial(_lstm_recurrent_kernel,
                               hidden_dim=H, t_chunk=t_chunk)
    seq, h_n, c_n = pl.pallas_call(
        kernel,
        out_shape=(jax.ShapeDtypeStruct((T, Bp, H), jnp.float32),
                   jax.ShapeDtypeStruct((Bp, H), jnp.float32),
                   jax.ShapeDtypeStruct((Bp, H), jnp.float32)),
        grid_spec=pltpu.PrefetchScalarGridSpec(
            num_scalar_prefetch=0,
            grid=(n_chunks,),
            in_specs=[
                pl.BlockSpec((t_chunk, Bp, G), lambda c: (c, 0, 0)),
                pl.BlockSpec((H, G), lambda c: (0, 0)),
            ],
            out_specs=(
                pl.BlockSpec((t_chunk, Bp, H), lambda c: (c, 0, 0)),
                pl.BlockSpec((Bp, H), lambda c: (0, 0)),
                pl.BlockSpec((Bp, H), lambda c: (0, 0)),
            ),
            scratch_shapes=[pltpu.VMEM((Bp, H), jnp.float32),
                            pltpu.VMEM((Bp, H), jnp.float32)],
        ),
        compiler_params=pltpu.CompilerParams(
            dimension_semantics=("arbitrary",)),   # true recurrence: sequential
    )(gates_x, w_hh_t_bf16)
    return seq, h_n, c_n


# ----------------------------------------------------------------------------
# Model wrapper (glue in plain JAX, hot path in Pallas)
# ----------------------------------------------------------------------------
def init_params(key, vocab_size, emb_dim, hidden_dim, num_layers):
    keys = jax.random.split(key, 2 + 4 * num_layers + 2)
    ki = iter(range(len(keys)))
    params = {}
    emb = 0.02 * jax.random.normal(keys[next(ki)], (vocab_size, emb_dim),
                                   jnp.float32)
    emb = emb.at[3].set(0.0)  # padding_idx=3
    params["embedding"] = emb

    bound = 1.0 / jnp.sqrt(hidden_dim)
    layers = []
    for layer in range(num_layers):
        in_dim = emb_dim if layer == 0 else hidden_dim
        w_ih = jax.random.uniform(keys[next(ki)], (4 * hidden_dim, in_dim),
                                  jnp.float32, -bound, bound)
        w_hh = jax.random.uniform(keys[next(ki)], (4 * hidden_dim, hidden_dim),
                                  jnp.float32, -bound, bound)
        b_ih = jax.random.uniform(keys[next(ki)], (4 * hidden_dim,),
                                  jnp.float32, -bound, bound)
        b_hh = jax.random.uniform(keys[next(ki)], (4 * hidden_dim,),
                                  jnp.float32, -bound, bound)
        layers.append({"w_ih": w_ih, "w_hh": w_hh, "b_ih": b_ih, "b_hh": b_hh})
    params["lstm"] = layers

    fc_bound = 1.0 / jnp.sqrt(hidden_dim)
    params["fc_w"] = jax.random.uniform(keys[next(ki)], (vocab_size, hidden_dim),
                                        jnp.float32, -fc_bound, fc_bound)
    params["fc_b"] = jax.random.uniform(keys[next(ki)], (vocab_size,),
                                        jnp.float32, -fc_bound, fc_bound)
    return params


def lstm_model_forward(params, input_ids, hidden_dim):
    """Matches LSTMModel.forward (eval mode).

    input_ids: (B, T) int32 -> logits (B, T, V),
    hidden = (h_n, c_n) each (num_layers, B, H).
    """
    # TODO(synk): dropout is a no-op here (inference semantics); training-mode
    # dropout masks are not implemented.
    B, T = input_ids.shape
    H = hidden_dim
    Bp = max(8, _round_up(B, 8))                    # pad batch to 8 sublanes

    emb = params["embedding"][input_ids]            # (B, T, E) gather (glue)
    x = jnp.transpose(emb, (1, 0, 2))               # time-major (T, B, E)
    if Bp != B:
        x = jnp.pad(x, ((0, 0), (0, Bp - B), (0, 0)))

    h_finals, c_finals = [], []
    for layer in params["lstm"]:
        in_dim = layer["w_ih"].shape[1]
        w_ih_t = layer["w_ih"].T.astype(jnp.bfloat16)             # (E, 4H)
        w_hh_t = layer["w_hh"].T.astype(jnp.bfloat16)             # (H, 4H)
        b_row = (layer["b_ih"] + layer["b_hh"])[None, :]          # (1, 4H) f32

        # Phase 1: hoisted, batched input projection (one big MXU matmul).
        gx = matmul_bias_pallas(x.reshape(T * Bp, in_dim), w_ih_t, b_row)
        gx = gx.reshape(T, Bp, 4 * H)

        # Phase 2: sequential recurrence, timestep loop inside the kernel.
        x, h_n, c_n = lstm_recurrent_pallas(gx, w_hh_t, H)
        h_finals.append(h_n[:B])
        c_finals.append(c_n[:B])

    out_bth = jnp.transpose(x[:, :B, :], (1, 0, 2))               # (B, T, H)
    flat = out_bth.reshape(B * T, H)
    logits_flat = matmul_bias_pallas(flat, params["fc_w"].T,
                                     params["fc_b"][None, :])
    logits = logits_flat.reshape(B, T, -1)
    hidden = (jnp.stack(h_finals, axis=0), jnp.stack(c_finals, axis=0))
    return logits, hidden


# ----------------------------------------------------------------------------
# Pure-JAX reference (same bf16-matmul / f32-state math) for correctness check
# ----------------------------------------------------------------------------
def reference_forward(params, input_ids, hidden_dim):
    B, T = input_ids.shape
    H = hidden_dim
    x = params["embedding"][input_ids]
    h_finals, c_finals = [], []
    for layer in params["lstm"]:
        w_ih = layer["w_ih"].astype(jnp.bfloat16)
        w_hh = layer["w_hh"].astype(jnp.bfloat16)
        b = layer["b_ih"] + layer["b_hh"]
        h = jnp.zeros((B, H), jnp.float32)
        c = jnp.zeros((B, H), jnp.float32)
        outs = []
        for t in range(T):
            gates = (jnp.dot(x[:, t, :].astype(jnp.bfloat16), w_ih.T,
                             preferred_element_type=jnp.float32)
                     + jnp.dot(h.astype(jnp.bfloat16), w_hh.T,
                               preferred_element_type=jnp.float32)
                     + b)
            i_g = jax.nn.sigmoid(gates[:, 0 * H:1 * H])
            f_g = jax.nn.sigmoid(gates[:, 1 * H:2 * H])
            g_g = jnp.tanh(gates[:, 2 * H:3 * H])
            o_g = jax.nn.sigmoid(gates[:, 3 * H:4 * H])
            c = f_g * c + i_g * g_g
            h = o_g * jnp.tanh(c)
            outs.append(h)
        x = jnp.stack(outs, axis=1)
        h_finals.append(h)
        c_finals.append(c)
    logits = (jnp.dot(x.reshape(B * T, H).astype(jnp.bfloat16),
                      params["fc_w"].T.astype(jnp.bfloat16),
                      preferred_element_type=jnp.float32)
              + params["fc_b"]).reshape(B, T, -1)
    return logits, (jnp.stack(h_finals), jnp.stack(c_finals))


# ----------------------------------------------------------------------------
if __name__ == "__main__":
    # Small, kernel-friendly shapes consistent with the module's structure.
    vocab_size, emb_dim, hidden_dim, num_layers = 256, 128, 128, 2
    B, T = 2, 8

    key = jax.random.PRNGKey(0)
    pkey, dkey = jax.random.split(key)
    params = init_params(pkey, vocab_size, emb_dim, hidden_dim, num_layers)
    input_ids = jax.random.randint(dkey, (B, T), 0, vocab_size, jnp.int32)

    fwd = jax.jit(functools.partial(lstm_model_forward, hidden_dim=hidden_dim))
    logits, (h_n, c_n) = fwd(params, input_ids)
    jax.block_until_ready((logits, h_n, c_n))

    ref_logits, (ref_h, ref_c) = reference_forward(params, input_ids, hidden_dim)
    assert logits.shape == (B, T, vocab_size)
    assert h_n.shape == (num_layers, B, hidden_dim)
    assert c_n.shape == (num_layers, B, hidden_dim)
    assert jnp.allclose(logits, ref_logits, atol=5e-3, rtol=5e-3), \
        float(jnp.max(jnp.abs(logits - ref_logits)))
    assert jnp.allclose(h_n, ref_h, atol=5e-3, rtol=5e-3)
    assert jnp.allclose(c_n, ref_c, atol=5e-3, rtol=5e-3)

    print("KERNEL_OK")
</pallas_src>

<mosaic_0001>
module attributes {stable_mosaic.version = 11 : i64} {
  func.func @_matmul_bias_kernel(%arg0: i32, %arg1: i32, %arg2: i32, %arg3: memref<64x128xbf16, #tpu.memory_space<vmem>>, %arg4: memref<128x512xbf16, #tpu.memory_space<vmem>>, %arg5: memref<1x512xf32, #tpu.memory_space<vmem>>, %arg6: memref<64x512xf32, #tpu.memory_space<vmem>>, %arg7: memref<64x512xf32, #tpu.memory_space<vmem>>) attributes {dimension_semantics = [#tpu.dimension_semantics<parallel>, #tpu.dimension_semantics<parallel>, #tpu.dimension_semantics<arbitrary>], iteration_bounds = array<i64: 1, 1, 1>, scalar_prefetch = 0 : i64, scratch_operands = 1 : i64, tpu.core_type = #tpu.core_type<tc>, window_params = [{transform_indices = @transform_0, window_bounds = array<i64: 64, 128>}, {transform_indices = @transform_1, window_bounds = array<i64: 128, 512>}, {transform_indices = @transform_2, window_bounds = array<i64: 1, 512>}, {transform_indices = @transform_3, window_bounds = array<i64: 64, 512>}]} {
    %c0_i32 = arith.constant 0 : i32
    %0 = arith.cmpi eq, %arg2, %c0_i32 : i32
    %1 = arith.extui %0 : i1 to i32
    %c0_i32_0 = arith.constant 0 : i32
    %2 = arith.cmpi ne, %1, %c0_i32_0 : i32
    scf.if %2 {
      %cst_10 = arith.constant 0.000000e+00 : f32
      %12 = vector.broadcast %cst_10 : f32 to vector<64x512xf32>
      %c0_11 = arith.constant 0 : index
      %c0_12 = arith.constant 0 : index
      %13 = vector.load %arg7[%c0_11, %c0_12] : memref<64x512xf32, #tpu.memory_space<vmem>>, vector<64x512xf32>
      tpu.vector_store %arg7[%c0_11, %c0_12], %12 {strides = array<i32>} : memref<64x512xf32, #tpu.memory_space<vmem>>, vector<64x512xf32>,
    } else {
    }
    %c0 = arith.constant 0 : index
    %c0_1 = arith.constant 0 : index
    %3 = vector.load %arg7[%c0, %c0_1] : memref<64x512xf32, #tpu.memory_space<vmem>>, vector<64x512xf32>
    %c0_2 = arith.constant 0 : index
    %c0_3 = arith.constant 0 : index
    %4 = vector.load %arg3[%c0_2, %c0_3] : memref<64x128xbf16, #tpu.memory_space<vmem>>, vector<64x128xbf16>
    %c0_4 = arith.constant 0 : index
    %c0_5 = arith.constant 0 : index
    %5 = vector.load %arg4[%c0_4, %c0_5] : memref<128x512xbf16, #tpu.memory_space<vmem>>, vector<128x512xbf16>
    %cst = arith.constant dense<0.000000e+00> : vector<64x512xf32>
    %6 = tpu.matmul %4, %5, %cst {dimension_numbers = #tpu.dot_dimension_numbers<[1], [0], [0], [1], [0, 0, 1, 1], [], []>} : vector<64x128xbf16>, vector<128x512xbf16>, vector<64x512xf32> -> vector<64x512xf32>
    %7 = arith.addf %3, %6 : vector<64x512xf32>
    %c0_6 = arith.constant 0 : index
    %c0_7 = arith.constant 0 : index
    %8 = vector.load %arg7[%c0_6, %c0_7] : memref<64x512xf32, #tpu.memory_space<vmem>>, vector<64x512xf32>
    tpu.vector_store %arg7[%c0_6, %c0_7], %7 {strides = array<i32>} : memref<64x512xf32, #tpu.memory_space<vmem>>, vector<64x512xf32>,
    %c0_i32_8 = arith.constant 0 : i32
    %9 = arith.cmpi eq, %arg2, %c0_i32_8 : i32
    %10 = arith.extui %9 : i1 to i32
    %c0_i32_9 = arith.constant 0 : i32
    %11 = arith.cmpi ne, %10, %c0_i32_9 : i32
    scf.if %11 {
      %c0_10 = arith.constant 0 : index
      %c0_11 = arith.constant 0 : index
      %12 = vector.load %arg7[%c0_10, %c0_11] : memref<64x512xf32, #tpu.memory_space<vmem>>, vector<64x512xf32>
      %c0_12 = arith.constant 0 : index
      %c0_13 = arith.constant 0 : index
      %13 = vector.load %arg5[%c0_12, %c0_13] : memref<1x512xf32, #tpu.memory_space<vmem>>, vector<1x512xf32>
      %14 = vector.broadcast %13 : vector<1x512xf32> to vector<64x512xf32>
      %15 = arith.addf %12, %14 : vector<64x512xf32>
      %c0_14 = arith.constant 0 : index
      %c0_15 = arith.constant 0 : index
      %16 = vector.load %arg6[%c0_14, %c0_15] : memref<64x512xf32, #tpu.memory_space<vmem>>, vector<64x512xf32>
      tpu.vector_store %arg6[%c0_14, %c0_15], %15 {strides = array<i32>} : memref<64x512xf32, #tpu.memory_space<vmem>>, vector<64x512xf32>,
    } else {
    }
    return
  }
  func.func @transform_0(%arg0: i32, %arg1: i32, %arg2: i32) -> (i32, i32) {
    %c0_i32 = arith.constant 0 : i32
    return %arg0, %arg2 : i32, i32
  }
  func.func @transform_1(%arg0: i32, %arg1: i32, %arg2: i32) -> (i32, i32) {
    %c0_i32 = arith.constant 0 : i32
    return %arg2, %arg1 : i32, i32
  }
  func.func @transform_2(%arg0: i32, %arg1: i32, %arg2: i32) -> (i32, i32) {
    %c0_i32 = arith.constant 0 : i32
    %c0_i32_0 = arith.constant 0 : i32
    return %c0_i32, %arg1 : i32, i32
  }
  func.func @transform_3(%arg0: i32, %arg1: i32, %arg2: i32) -> (i32, i32) {
    %c0_i32 = arith.constant 0 : i32
    return %arg0, %arg1 : i32, i32
  }
}

module attributes {stable_mosaic.version = 11 : i64} {
  func.func @_lstm_recurrent_kernel(%arg0: i32, %arg1: memref<8x8x512xf32, #tpu.memory_space<vmem>>, %arg2: memref<128x512xbf16, #tpu.memory_space<vmem>>, %arg3: memref<8x8x128xf32, #tpu.memory_space<vmem>>, %arg4: memref<8x128xf32, #tpu.memory_space<vmem>>, %arg5: memref<8x128xf32, #tpu.memory_space<vmem>>, %arg6: memref<8x128xf32, #tpu.memory_space<vmem>>, %arg7: memref<8x128xf32, #tpu.memory_space<vmem>>) attributes {dimension_semantics = [#tpu.dimension_semantics<arbitrary>], iteration_bounds = array<i64: 1>, scalar_prefetch = 0 : i64, scratch_operands = 2 : i64, tpu.core_type = #tpu.core_type<tc>, window_params = [{transform_indices = @transform_0, window_bounds = array<i64: 8, 8, 512>}, {pipeline_mode = #tpu.pipeline_mode<synchronous>, transform_indices = @transform_1, window_bounds = array<i64: 128, 512>}, {transform_indices = @transform_2, window_bounds = array<i64: 8, 8, 128>}, {pipeline_mode = #tpu.pipeline_mode<synchronous>, transform_indices = @transform_3, window_bounds = array<i64: 8, 128>}, {pipeline_mode = #tpu.pipeline_mode<synchronous>, transform_indices = @transform_4, window_bounds = array<i64: 8, 128>}]} {
    %c0_i32 = arith.constant 0 : i32
    %0 = arith.cmpi eq, %arg0, %c0_i32 : i32
    %1 = arith.extui %0 : i1 to i32
    %c0_i32_0 = arith.constant 0 : i32
    %2 = arith.cmpi ne, %1, %c0_i32_0 : i32
    scf.if %2 {
      %cst_76 = arith.constant 0.000000e+00 : f32
      %291 = vector.broadcast %cst_76 : f32 to vector<8x128xf32>
      %c0_77 = arith.constant 0 : index
      %c0_78 = arith.constant 0 : index
      %292 = vector.load %arg6[%c0_77, %c0_78] : memref<8x128xf32, #tpu.memory_space<vmem>>, vector<8x128xf32>
      tpu.vector_store %arg6[%c0_77, %c0_78], %291 {strides = array<i32>} : memref<8x128xf32, #tpu.memory_space<vmem>>, vector<8x128xf32>,
      %cst_79 = arith.constant 0.000000e+00 : f32
      %293 = vector.broadcast %cst_79 : f32 to vector<8x128xf32>
      %c0_80 = arith.constant 0 : index
      %c0_81 = arith.constant 0 : index
      %294 = vector.load %arg7[%c0_80, %c0_81] : memref<8x128xf32, #tpu.memory_space<vmem>>, vector<8x128xf32>
      tpu.vector_store %arg7[%c0_80, %c0_81], %293 {strides = array<i32>} : memref<8x128xf32, #tpu.memory_space<vmem>>, vector<8x128xf32>,
    } else {
    }
    %c0 = arith.constant 0 : index
    %c0_1 = arith.constant 0 : index
    %3 = vector.load %arg2[%c0, %c0_1] : memref<128x512xbf16, #tpu.memory_space<vmem>>, vector<128x512xbf16>
    %c0_2 = arith.constant 0 : index
    %c0_3 = arith.constant 0 : index
    %4 = vector.load %arg6[%c0_2, %c0_3] : memref<8x128xf32, #tpu.memory_space<vmem>>, vector<8x128xf32>
    %c0_4 = arith.constant 0 : index
    %c0_5 = arith.constant 0 : index
    %5 = vector.load %arg7[%c0_4, %c0_5] : memref<8x128xf32, #tpu.memory_space<vmem>>, vector<8x128xf32>
    %c0_i32_6 = arith.constant 0 : i32
    %6 = arith.index_cast %c0_i32_6 : i32 to index
    %c0_7 = arith.constant 0 : index
    %c0_8 = arith.constant 0 : index
    %7 = vector.load %arg1[%6, %c0_7, %c0_8] : memref<8x8x512xf32, #tpu.memory_space<vmem>>, vector<1x8x512xf32>
    %8 = vector.shape_cast %7 : vector<1x8x512xf32> to vector<8x512xf32>
    %9 = arith.truncf %4 : vector<8x128xf32> to vector<8x128xbf16>
    %cst = arith.constant dense<0.000000e+00> : vector<8x512xf32>
    %10 = tpu.matmul %9, %3, %cst {dimension_numbers = #tpu.dot_dimension_numbers<[1], [0], [0], [1], [0, 0, 1, 1], [], []>} : vector<8x128xbf16>, vector<128x512xbf16>, vector<8x512xf32> -> vector<8x512xf32>
    %11 = arith.addf %8, %10 : vector<8x512xf32>
    %12 = vector.extract_strided_slice %11 {offsets = [0, 0], sizes = [8, 128], strides = [1, 1]} : vector<8x512xf32> to vector<8x128xf32>
    %13 = arith.negf %12 : vector<8x128xf32>
    %14 = math.exp %13 : vector<8x128xf32>
    %cst_9 = arith.constant 1.000000e+00 : f32
    %15 = vector.broadcast %cst_9 : f32 to vector<8x128xf32>
    %16 = arith.addf %15, %14 : vector<8x128xf32>
    %17 = arith.divf %15, %16 : vector<8x128xf32>
    %18 = vector.extract_strided_slice %11 {offsets = [0, 128], sizes = [8, 128], strides = [1, 1]} : vector<8x512xf32> to vector<8x128xf32>
    %19 = arith.negf %18 : vector<8x128xf32>
    %20 = math.exp %19 : vector<8x128xf32>
    %cst_10 = arith.constant 1.000000e+00 : f32
    %21 = vector.broadcast %cst_10 : f32 to vector<8x128xf32>
    %22 = arith.addf %21, %20 : vector<8x128xf32>
    %23 = arith.divf %21, %22 : vector<8x128xf32>
    %24 = vector.extract_strided_slice %11 {offsets = [0, 256], sizes = [8, 128], strides = [1, 1]} : vector<8x512xf32> to vector<8x128xf32>
    %25 = math.tanh %24 : vector<8x128xf32>
    %26 = vector.extract_strided_slice %11 {offsets = [0, 384], sizes = [8, 128], strides = [1, 1]} : vector<8x512xf32> to vector<8x128xf32>
    %27 = arith.negf %26 : vector<8x128xf32>
    %28 = math.exp %27 : vector<8x128xf32>
    %cst_11 = arith.constant 1.000000e+00 : f32
    %29 = vector.broadcast %cst_11 : f32 to vector<8x128xf32>
    %30 = arith.addf %29, %28 : vector<8x128xf32>
    %31 = arith.divf %29, %30 : vector<8x128xf32>
    %32 = arith.mulf %23, %5 : vector<8x128xf32>
    %33 = arith.mulf %17, %25 : vector<8x128xf32>
    %34 = arith.addf %32, %33 : vector<8x128xf32>
    %35 = math.tanh %34 : vector<8x128xf32>
    %36 = arith.mulf %31, %35 : vector<8x128xf32>
    %37 = arith.index_cast %c0_i32_6 : i32 to index
    %c0_12 = arith.constant 0 : index
    %c0_13 = arith.constant 0 : index
    %38 = vector.load %arg3[%37, %c0_12, %c0_13] : memref<8x8x128xf32, #tpu.memory_space<vmem>>, vector<1x8x128xf32>
    %39 = vector.shape_cast %38 : vector<1x8x128xf32> to vector<8x128xf32>
    %40 = vector.shape_cast %36 : vector<8x128xf32> to vector<1x8x128xf32>
    tpu.vector_store %arg3[%37, %c0_12, %c0_13], %40 {strides = array<i32>} : memref<8x8x128xf32, #tpu.memory_space<vmem>>, vector<1x8x128xf32>,
    %c1_i32 = arith.constant 1 : i32
    %41 = arith.index_cast %c1_i32 : i32 to index
    %c0_14 = arith.constant 0 : index
    %c0_15 = arith.constant 0 : index
    %42 = vector.load %arg1[%41, %c0_14, %c0_15] : memref<8x8x512xf32, #tpu.memory_space<vmem>>, vector<1x8x512xf32>
    %43 = vector.shape_cast %42 : vector<1x8x512xf32> to vector<8x512xf32>
    %44 = arith.truncf %36 : vector<8x128xf32> to vector<8x128xbf16>
    %cst_16 = arith.constant dense<0.000000e+00> : vector<8x512xf32>
    %45 = tpu.matmul %44, %3, %cst_16 {dimension_numbers = #tpu.dot_dimension_numbers<[1], [0], [0], [1], [0, 0, 1, 1], [], []>} : vector<8x128xbf16>, vector<128x512xbf16>, vector<8x512xf32> -> vector<8x512xf32>
    %46 = arith.addf %43, %45 : vector<8x512xf32>
    %47 = vector.extract_strided_slice %46 {offsets = [0, 0], sizes = [8, 128], strides = [1, 1]} : vector<8x512xf32> to vector<8x128xf32>
    %48 = arith.negf %47 : vector<8x128xf32>
    %49 = math.exp %48 : vector<8x128xf32>
    %cst_17 = arith.constant 1.000000e+00 : f32
    %50 = vector.broadcast %cst_17 : f32 to vector<8x128xf32>
    %51 = arith.addf %50, %49 : vector<8x128xf32>
    %52 = arith.divf %50, %51 : vector<8x128xf32>
    %53 = vector.extract_strided_slice %46 {offsets = [0, 128], sizes = [8, 128], strides = [1, 1]} : vector<8x512xf32> to vector<8x128xf32>
    %54 = arith.negf %53 : vector<8x128xf32>
    %55 = math.exp %54 : vector<8x128xf32>
    %cst_18 = arith.constant 1.000000e+00 : f32
    %56 = vector.broadcast %cst_18 : f32 to vector<8x128xf32>
    %57 = arith.addf %56, %55 : vector<8x128xf32>
    %58 = arith.divf %56, %57 : vector<8x128xf32>
    %59 = vector.extract_strided_slice %46 {offsets = [0, 256], sizes = [8, 128], strides = [1, 1]} : vector<8x512xf32> to vector<8x128xf32>
    %60 = math.tanh %59 : vector<8x128xf32>
    %61 = vector.extract_strided_slice %46 {offsets = [0, 384], sizes = [8, 128], strides = [1, 1]} : vector<8x512xf32> to vector<8x128xf32>
    %62 = arith.negf %61 : vector<8x128xf32>
    %63 = math.exp %62 : vector<8x128xf32>
    %cst_19 = arith.constant 1.000000e+00 : f32
    %64 = vector.broadcast %cst_19 : f32 to vector<8x128xf32>
    %65 = arith.addf %64, %63 : vector<8x128xf32>
    %66 = arith.divf %64, %65 : vector<8x128xf32>
    %67 = arith.mulf %58, %34 : vector<8x128xf32>
    %68 = arith.mulf %52, %60 : vector<8x128xf32>
    %69 = arith.addf %67, %68 : vector<8x128xf32>
    %70 = math.tanh %69 : vector<8x128xf32>
    %71 = arith.mulf %66, %70 : vector<8x128xf32>
    %72 = arith.index_cast %c1_i32 : i32 to index
    %c0_20 = arith.constant 0 : index
    %c0_21 = arith.constant 0 : index
    %73 = vector.load %arg3[%72, %c0_20, %c0_21] : memref<8x8x128xf32, #tpu.memory_space<vmem>>, vector<1x8x128xf32>
    %74 = vector.shape_cast %73 : vector<1x8x128xf32> to vector<8x128xf32>
    %75 = vector.shape_cast %71 : vector<8x128xf32> to vector<1x8x128xf32>
    tpu.vector_store %arg3[%72, %c0_20, %c0_21], %75 {strides = array<i32>} : memref<8x8x128xf32, #tpu.memory_space<vmem>>, vector<1x8x128xf32>,
    %c2_i32 = arith.constant 2 : i32
    %76 = arith.index_cast %c2_i32 : i32 to index
    %c0_22 = arith.constant 0 : index
    %c0_23 = arith.constant 0 : index
    %77 = vector.load %arg1[%76, %c0_22, %c0_23] : memref<8x8x512xf32, #tpu.memory_space<vmem>>, vector<1x8x512xf32>
    %78 = vector.shape_cast %77 : vector<1x8x512xf32> to vector<8x512xf32>
    %79 = arith.truncf %71 : vector<8x128xf32> to vector<8x128xbf16>
    %cst_24 = arith.constant dense<0.000000e+00> : vector<8x512xf32>
    %80 = tpu.matmul %79, %3, %cst_24 {dimension_numbers = #tpu.dot_dimension_numbers<[1], [0], [0], [1], [0, 0, 1, 1], [], []>} : vector<8x128xbf16>, vector<128x512xbf16>, vector<8x512xf32> -> vector<8x512xf32>
    %81 = arith.addf %78, %80 : vector<8x512xf32>
    %82 = vector.extract_strided_slice %81 {offsets = [0, 0], sizes = [8, 128], strides = [1, 1]} : vector<8x512xf32> to vector<8x128xf32>
    %83 = arith.negf %82 : vector<8x128xf32>
    %84 = math.exp %83 : vector<8x128xf32>
    %cst_25 = arith.constant 1.000000e+00 : f32
    %85 = vector.broadcast %cst_25 : f32 to vector<8x128xf32>
    %86 = arith.addf %85, %84 : vector<8x128xf32>
    %87 = arith.divf %85, %86 : vector<8x128xf32>
    %88 = vector.extract_strided_slice %81 {offsets = [0, 128], sizes = [8, 128], strides = [1, 1]} : vector<8x512xf32> to vector<8x128xf32>
    %89 = arith.negf %88 : vector<8x128xf32>
    %90 = math.exp %89 : vector<8x128xf32>
    %cst_26 = arith.constant 1.000000e+00 : f32
    %91 = vector.broadcast %cst_26 : f32 to vector<8x128xf32>
    %92 = arith.addf %91, %90 : vector<8x128xf32>
    %93 = arith.divf %91, %92 : vector<8x128xf32>
    %94 = vector.extract_strided_slice %81 {offsets = [0, 256], sizes = [8, 128], strides = [1, 1]} : vector<8x512xf32> to vector<8x128xf32>
    %95 = math.tanh %94 : vector<8x128xf32>
    %96 = vector.extract_strided_slice %81 {offsets = [0, 384], sizes = [8, 128], strides = [1, 1]} : vector<8x512xf32> to vector<8x128xf32>
    %97 = arith.negf %96 : vector<8x128xf32>
    %98 = math.exp %97 : vector<8x128xf32>
    %cst_27 = arith.constant 1.000000e+00 : f32
    %99 = vector.broadcast %cst_27 : f32 to vector<8x128xf32>
    %100 = arith.addf %99, %98 : vector<8x128xf32>
    %101 = arith.divf %99, %100 : vector<8x128xf32>
    %102 = arith.mulf %93, %69 : vector<8x128xf32>
    %103 = arith.mulf %87, %95 : vector<8x128xf32>
    %104 = arith.addf %102, %103 : vector<8x128xf32>
    %105 = math.tanh %104 : vector<8x128xf32>
    %106 = arith.mulf %101, %105 : vector<8x128xf32>
    %107 = arith.index_cast %c2_i32 : i32 to index
    %c0_28 = arith.constant 0 : index
    %c0_29 = arith.constant 0 : index
    %108 = vector.load %arg3[%107, %c0_28, %c0_29] : memref<8x8x128xf32, #tpu.memory_space<vmem>>, vector<1x8x128xf32>
    %109 = vector.shape_cast %108 : vector<1x8x128xf32> to vector<8x128xf32>
    %110 = vector.shape_cast %106 : vector<8x128xf32> to vector<1x8x128xf32>
    tpu.vector_store %arg3[%107, %c0_28, %c0_29], %110 {strides = array<i32>} : memref<8x8x128xf32, #tpu.memory_space<vmem>>, vector<1x8x128xf32>,
    %c3_i32 = arith.constant 3 : i32
    %111 = arith.index_cast %c3_i32 : i32 to index
    %c0_30 = arith.constant 0 : index
    %c0_31 = arith.constant 0 : index
    %112 = vector.load %arg1[%111, %c0_30, %c0_31] : memref<8x8x512xf32, #tpu.memory_space<vmem>>, vector<1x8x512xf32>
    %113 = vector.shape_cast %112 : vector<1x8x512xf32> to vector<8x512xf32>
    %114 = arith.truncf %106 : vector<8x128xf32> to vector<8x128xbf16>
    %cst_32 = arith.constant dense<0.000000e+00> : vector<8x512xf32>
    %115 = tpu.matmul %114, %3, %cst_32 {dimension_numbers = #tpu.dot_dimension_numbers<[1], [0], [0], [1], [0, 0, 1, 1], [], []>} : vector<8x128xbf16>, vector<128x512xbf16>, vector<8x512xf32> -> vector<8x512xf32>
    %116 = arith.addf %113, %115 : vector<8x512xf32>
    %117 = vector.extract_strided_slice %116 {offsets = [0, 0], sizes = [8, 128], strides = [1, 1]} : vector<8x512xf32> to vector<8x128xf32>
    %118 = arith.negf %117 : vector<8x128xf32>
    %119 = math.exp %118 : vector<8x128xf32>
    %cst_33 = arith.constant 1.000000e+00 : f32
    %120 = vector.broadcast %cst_33 : f32 to vector<8x128xf32>
    %121 = arith.addf %120, %119 : vector<8x128xf32>
    %122 = arith.divf %120, %121 : vector<8x128xf32>
    %123 = vector.extract_strided_slice %116 {offsets = [0, 128], sizes = [8, 128], strides = [1, 1]} : vector<8x512xf32> to vector<8x128xf32>
    %124 = arith.negf %123 : vector<8x128xf32>
    %125 = math.exp %124 : vector<8x128xf32>
    %cst_34 = arith.constant 1.000000e+00 : f32
    %126 = vector.broadcast %cst_34 : f32 to vector<8x128xf32>
    %127 = arith.addf %126, %125 : vector<8x128xf32>
    %128 = arith.divf %126, %127 : vector<8x128xf32>
    %129 = vector.extract_strided_slice %116 {offsets = [0, 256], sizes = [8, 128], strides = [1, 1]} : vector<8x512xf32> to vector<8x128xf32>
    %130 = math.tanh %129 : vector<8x128xf32>
    %131 = vector.extract_strided_slice %116 {offsets = [0, 384], sizes = [8, 128], strides = [1, 1]} : vector<8x512xf32> to vector<8x128xf32>
    %132 = arith.negf %131 : vector<8x128xf32>
    %133 = math.exp %132 : vector<8x128xf32>
    %cst_35 = arith.constant 1.000000e+00 : f32
    %134 = vector.broadcast %cst_35 : f32 to vector<8x128xf32>
    %135 = arith.addf %134, %133 : vector<8x128xf32>
    %136 = arith.divf %134, %135 : vector<8x128xf32>
    %137 = arith.mulf %128, %104 : vector<8x128xf32>
    %138 = arith.mulf %122, %130 : vector<8x128xf32>
    %139 = arith.addf %137, %138 : vector<8x128xf32>
    %140 = math.tanh %139 : vector<8x128xf32>
    %141 = arith.mulf %136, %140 : vector<8x128xf32>
    %142 = arith.index_cast %c3_i32 : i32 to index
    %c0_36 = arith.constant 0 : index
    %c0_37 = arith.constant 0 : index
    %143 = vector.load %arg3[%142, %c0_36, %c0_37] : memref<8x8x128xf32, #tpu.memory_space<vmem>>, vector<1x8x128xf32>
    %144 = vector.shape_cast %143 : vector<1x8x128xf32> to vector<8x128xf32>
    %145 = vector.shape_cast %141 : vector<8x128xf32> to vector<1x8x128xf32>
    tpu.vector_store %arg3[%142, %c0_36, %c0_37], %145 {strides = array<i32>} : memref<8x8x128xf32, #tpu.memory_space<vmem>>, vector<1x8x128xf32>,
    %c4_i32 = arith.constant 4 : i32
    %146 = arith.index_cast %c4_i32 : i32 to index
    %c0_38 = arith.constant 0 : index
    %c0_39 = arith.constant 0 : index
    %147 = vector.load %arg1[%146, %c0_38, %c0_39] : memref<8x8x512xf32, #tpu.memory_space<vmem>>, vector<1x8x512xf32>
    %148 = vector.shape_cast %147 : vector<1x8x512xf32> to vector<8x512xf32>
    %149 = arith.truncf %141 : vector<8x128xf32> to vector<8x128xbf16>
    %cst_40 = arith.constant dense<0.000000e+00> : vector<8x512xf32>
    %150 = tpu.matmul %149, %3, %cst_40 {dimension_numbers = #tpu.dot_dimension_numbers<[1], [0], [0], [1], [0, 0, 1, 1], [], []>} : vector<8x128xbf16>, vector<128x512xbf16>, vector<8x512xf32> -> vector<8x512xf32>
    %151 = arith.addf %148, %150 : vector<8x512xf32>
    %152 = vector.extract_strided_slice %151 {offsets = [0, 0], sizes = [8, 128], strides = [1, 1]} : vector<8x512xf32> to vector<8x128xf32>
    %153 = arith.negf %152 : vector<8x128xf32>
    %154 = math.exp %153 : vector<8x128xf32>
    %cst_41 = arith.constant 1.000000e+00 : f32
    %155 = vector.broadcast %cst_41 : f32 to vector<8x128xf32>
    %156 = arith.addf %155, %154 : vector<8x128xf32>
    %157 = arith.divf %155, %156 : vector<8x128xf32>
    %158 = vector.extract_strided_slice %151 {offsets = [0, 128], sizes = [8, 128], strides = [1, 1]} : vector<8x512xf32> to vector<8x128xf32>
    %159 = arith.negf %158 : vector<8x128xf32>
    %160 = math.exp %159 : vector<8x128xf32>
    %cst_42 = arith.constant 1.000000e+00 : f32
    %161 = vector.broadcast %cst_42 : f32 to vector<8x128xf32>
    %162 = arith.addf %161, %160 : vector<8x128xf32>
    %163 = arith.divf %161, %162 : vector<8x128xf32>
    %164 = vector.extract_strided_slice %151 {offsets = [0, 256], sizes = [8, 128], strides = [1, 1]} : vector<8x512xf32> to vector<8x128xf32>
    %165 = math.tanh %164 : vector<8x128xf32>
    %166 = vector.extract_strided_slice %151 {offsets = [0, 384], sizes = [8, 128], strides = [1, 1]} : vector<8x512xf32> to vector<8x128xf32>
    %167 = arith.negf %166 : vector<8x128xf32>
    %168 = math.exp %167 : vector<8x128xf32>
    %cst_43 = arith.constant 1.000000e+00 : f32
    %169 = vector.broadcast %cst_43 : f32 to vector<8x128xf32>
    %170 = arith.addf %169, %168 : vector<8x128xf32>
    %171 = arith.divf %169, %170 : vector<8x128xf32>
    %172 = arith.mulf %163, %139 : vector<8x128xf32>
    %173 = arith.mulf %157, %165 : vector<8x128xf32>
    %174 = arith.addf %172, %173 : vector<8x128xf32>
    %175 = math.tanh %174 : vector<8x128xf32>
    %176 = arith.mulf %171, %175 : vector<8x128xf32>
    %177 = arith.index_cast %c4_i32 : i32 to index
    %c0_44 = arith.constant 0 : index
    %c0_45 = arith.constant 0 : index
    %178 = vector.load %arg3[%177, %c0_44, %c0_45] : memref<8x8x128xf32, #tpu.memory_space<vmem>>, vector<1x8x128xf32>
    %179 = vector.shape_cast %178 : vector<1x8x128xf32> to vector<8x128xf32>
    %180 = vector.shape_cast %176 : vector<8x128xf32> to vector<1x8x128xf32>
    tpu.vector_store %arg3[%177, %c0_44, %c0_45], %180 {strides = array<i32>} : memref<8x8x128xf32, #tpu.memory_space<vmem>>, vector<1x8x128xf32>,
    %c5_i32 = arith.constant 5 : i32
    %181 = arith.index_cast %c5_i32 : i32 to index
    %c0_46 = arith.constant 0 : index
    %c0_47 = arith.constant 0 : index
    %182 = vector.load %arg1[%181, %c0_46, %c0_47] : memref<8x8x512xf32, #tpu.memory_space<vmem>>, vector<1x8x512xf32>
    %183 = vector.shape_cast %182 : vector<1x8x512xf32> to vector<8x512xf32>
    %184 = arith.truncf %176 : vector<8x128xf32> to vector<8x128xbf16>
    %cst_48 = arith.constant dense<0.000000e+00> : vector<8x512xf32>
    %185 = tpu.matmul %184, %3, %cst_48 {dimension_numbers = #tpu.dot_dimension_numbers<[1], [0], [0], [1], [0, 0, 1, 1], [], []>} : vector<8x128xbf16>, vector<128x512xbf16>, vector<8x512xf32> -> vector<8x512xf32>
    %186 = arith.addf %183, %185 : vector<8x512xf32>
    %187 = vector.extract_strided_slice %186 {offsets = [0, 0], sizes = [8, 128], strides = [1, 1]} : vector<8x512xf32> to vector<8x128xf32>
    %188 = arith.negf %187 : vector<8x128xf32>
    %189 = math.exp %188 : vector<8x128xf32>
    %cst_49 = arith.constant 1.000000e+00 : f32
    %190 = vector.broadcast %cst_49 : f32 to vector<8x128xf32>
    %191 = arith.addf %190, %189 : vector<8x128xf32>
    %192 = arith.divf %190, %191 : vector<8x128xf32>
    %193 = vector.extract_strided_slice %186 {offsets = [0, 128], sizes = [8, 128], strides = [1, 1]} : vector<8x512xf32> to vector<8x128xf32>
    %194 = arith.negf %193 : vector<8x128xf32>
    %195 = math.exp %194 : vector<8x128xf32>
    %cst_50 = arith.constant 1.000000e+00 : f32
    %196 = vector.broadcast %cst_50 : f32 to vector<8x128xf32>
    %197 = arith.addf %196, %195 : vector<8x128xf32>
    %198 = arith.divf %196, %197 : vector<8x128xf32>
    %199 = vector.extract_strided_slice %186 {offsets = [0, 256], sizes = [8, 128], strides = [1, 1]} : vector<8x512xf32> to vector<8x128xf32>
    %200 = math.tanh %199 : vector<8x128xf32>
    %201 = vector.extract_strided_slice %186 {offsets = [0, 384], sizes = [8, 128], strides = [1, 1]} : vector<8x512xf32> to vector<8x128xf32>
    %202 = arith.negf %201 : vector<8x128xf32>
    %203 = math.exp %202 : vector<8x128xf32>
    %cst_51 = arith.constant 1.000000e+00 : f32
    %204 = vector.broadcast %cst_51 : f32 to vector<8x128xf32>
    %205 = arith.addf %204, %203 : vector<8x128xf32>
    %206 = arith.divf %204, %205 : vector<8x128xf32>
    %207 = arith.mulf %198, %174 : vector<8x128xf32>
    %208 = arith.mulf %192, %200 : vector<8x128xf32>
    %209 = arith.addf %207, %208 : vector<8x128xf32>
    %210 = math.tanh %209 : vector<8x128xf32>
    %211 = arith.mulf %206, %210 : vector<8x128xf32>
    %212 = arith.index_cast %c5_i32 : i32 to index
    %c0_52 = arith.constant 0 : index
    %c0_53 = arith.constant 0 : index
    %213 = vector.load %arg3[%212, %c0_52, %c0_53] : memref<8x8x128xf32, #tpu.memory_space<vmem>>, vector<1x8x128xf32>
    %214 = vector.shape_cast %213 : vector<1x8x128xf32> to vector<8x128xf32>
    %215 = vector.shape_cast %211 : vector<8x128xf32> to vector<1x8x128xf32>
    tpu.vector_store %arg3[%212, %c0_52, %c0_53], %215 {strides = array<i32>} : memref<8x8x128xf32, #tpu.memory_space<vmem>>, vector<1x8x128xf32>,
    %c6_i32 = arith.constant 6 : i32
    %216 = arith.index_cast %c6_i32 : i32 to index
    %c0_54 = arith.constant 0 : index
    %c0_55 = arith.constant 0 : index
    %217 = vector.load %arg1[%216, %c0_54, %c0_55] : memref<8x8x512xf32, #tpu.memory_space<vmem>>, vector<1x8x512xf32>
    %218 = vector.shape_cast %217 : vector<1x8x512xf32> to vector<8x512xf32>
    %219 = arith.truncf %211 : vector<8x128xf32> to vector<8x128xbf16>
    %cst_56 = arith.constant dense<0.000000e+00> : vector<8x512xf32>
    %220 = tpu.matmul %219, %3, %cst_56 {dimension_numbers = #tpu.dot_dimension_numbers<[1], [0], [0], [1], [0, 0, 1, 1], [], []>} : vector<8x128xbf16>, vector<128x512xbf16>, vector<8x512xf32> -> vector<8x512xf32>
    %221 = arith.addf %218, %220 : vector<8x512xf32>
    %222 = vector.extract_strided_slice %221 {offsets = [0, 0], sizes = [8, 128], strides = [1, 1]} : vector<8x512xf32> to vector<8x128xf32>
    %223 = arith.negf %222 : vector<8x128xf32>
    %224 = math.exp %223 : vector<8x128xf32>
    %cst_57 = arith.constant 1.000000e+00 : f32
    %225 = vector.broadcast %cst_57 : f32 to vector<8x128xf32>
    %226 = arith.addf %225, %224 : vector<8x128xf32>
    %227 = arith.divf %225, %226 : vector<8x128xf32>
    %228 = vector.extract_strided_slice %221 {offsets = [0, 128], sizes = [8, 128], strides = [1, 1]} : vector<8x512xf32> to vector<8x128xf32>
    %229 = arith.negf %228 : vector<8x128xf32>
    %230 = math.exp %229 : vector<8x128xf32>
    %cst_58 = arith.constant 1.000000e+00 : f32
    %231 = vector.broadcast %cst_58 : f32 to vector<8x128xf32>
    %232 = arith.addf %231, %230 : vector<8x128xf32>
    %233 = arith.divf %231, %232 : vector<8x128xf32>
    %234 = vector.extract_strided_slice %221 {offsets = [0, 256], sizes = [8, 128], strides = [1, 1]} : vector<8x512xf32> to vector<8x128xf32>
    %235 = math.tanh %234 : vector<8x128xf32>
    %236 = vector.extract_strided_slice %221 {offsets = [0, 384], sizes = [8, 128], strides = [1, 1]} : vector<8x512xf32> to vector<8x128xf32>
    %237 = arith.negf %236 : vector<8x128xf32>
    %238 = math.exp %237 : vector<8x128xf32>
    %cst_59 = arith.constant 1.000000e+00 : f32
    %239 = vector.broadcast %cst_59 : f32 to vector<8x128xf32>
    %240 = arith.addf %239, %238 : vector<8x128xf32>
    %241 = arith.divf %239, %240 : vector<8x128xf32>
    %242 = arith.mulf %233, %209 : vector<8x128xf32>
    %243 = arith.mulf %227, %235 : vector<8x128xf32>
    %244 = arith.addf %242, %243 : vector<8x128xf32>
    %245 = math.tanh %244 : vector<8x128xf32>
    %246 = arith.mulf %241, %245 : vector<8x128xf32>
    %247 = arith.index_cast %c6_i32 : i32 to index
    %c0_60 = arith.constant 0 : index
    %c0_61 = arith.constant 0 : index
    %248 = vector.load %arg3[%247, %c0_60, %c0_61] : memref<8x8x128xf32, #tpu.memory_space<vmem>>, vector<1x8x128xf32>
    %249 = vector.shape_cast %248 : vector<1x8x128xf32> to vector<8x128xf32>
    %250 = vector.shape_cast %246 : vector<8x128xf32> to vector<1x8x128xf32>
    tpu.vector_store %arg3[%247, %c0_60, %c0_61], %250 {strides = array<i32>} : memref<8x8x128xf32, #tpu.memory_space<vmem>>, vector<1x8x128xf32>,
    %c7_i32 = arith.constant 7 : i32
    %251 = arith.index_cast %c7_i32 : i32 to index
    %c0_62 = arith.constant 0 : index
    %c0_63 = arith.constant 0 : index
    %252 = vector.load %arg1[%251, %c0_62, %c0_63] : memref<8x8x512xf32, #tpu.memory_space<vmem>>, vector<1x8x512xf32>
    %253 = vector.shape_cast %252 : vector<1x8x512xf32> to vector<8x512xf32>
    %254 = arith.truncf %246 : vector<8x128xf32> to vector<8x128xbf16>
    %cst_64 = arith.constant dense<0.000000e+00> : vector<8x512xf32>
    %255 = tpu.matmul %254, %3, %cst_64 {dimension_numbers = #tpu.dot_dimension_numbers<[1], [0], [0], [1], [0, 0, 1, 1], [], []>} : vector<8x128xbf16>, vector<128x512xbf16>, vector<8x512xf32> -> vector<8x512xf32>
    %256 = arith.addf %253, %255 : vector<8x512xf32>
    %257 = vector.extract_strided_slice %256 {offsets = [0, 0], sizes = [8, 128], strides = [1, 1]} : vector<8x512xf32> to vector<8x128xf32>
    %258 = arith.negf %257 : vector<8x128xf32>
    %259 = math.exp %258 : vector<8x128xf32>
    %cst_65 = arith.constant 1.000000e+00 : f32
    %260 = vector.broadcast %cst_65 : f32 to vector<8x128xf32>
    %261 = arith.addf %260, %259 : vector<8x128xf32>
    %262 = arith.divf %260, %261 : vector<8x128xf32>
    %263 = vector.extract_strided_slice %256 {offsets = [0, 128], sizes = [8, 128], strides = [1, 1]} : vector<8x512xf32> to vector<8x128xf32>
    %264 = arith.negf %263 : vector<8x128xf32>
    %265 = math.exp %264 : vector<8x128xf32>
    %cst_66 = arith.constant 1.000000e+00 : f32
    %266 = vector.broadcast %cst_66 : f32 to vector<8x128xf32>
    %267 = arith.addf %266, %265 : vector<8x128xf32>
    %268 = arith.divf %266, %267 : vector<8x128xf32>
    %269 = vector.extract_strided_slice %256 {offsets = [0, 256], sizes = [8, 128], strides = [1, 1]} : vector<8x512xf32> to vector<8x128xf32>
    %270 = math.tanh %269 : vector<8x128xf32>
    %271 = vector.extract_strided_slice %256 {offsets = [0, 384], sizes = [8, 128], strides = [1, 1]} : vector<8x512xf32> to vector<8x128xf32>
    %272 = arith.negf %271 : vector<8x128xf32>
    %273 = math.exp %272 : vector<8x128xf32>
    %cst_67 = arith.constant 1.000000e+00 : f32
    %274 = vector.broadcast %cst_67 : f32 to vector<8x128xf32>
    %275 = arith.addf %274, %273 : vector<8x128xf32>
    %276 = arith.divf %274, %275 : vector<8x128xf32>
    %277 = arith.mulf %268, %244 : vector<8x128xf32>
    %278 = arith.mulf %262, %270 : vector<8x128xf32>
    %279 = arith.addf %277, %278 : vector<8x128xf32>
    %280 = math.tanh %279 : vector<8x128xf32>
    %281 = arith.mulf %276, %280 : vector<8x128xf32>
    %282 = arith.index_cast %c7_i32 : i32 to index
    %c0_68 = arith.constant 0 : index
    %c0_69 = arith.constant 0 : index
    %283 = vector.load %arg3[%282, %c0_68, %c0_69] : memref<8x8x128xf32, #tpu.memory_space<vmem>>, vector<1x8x128xf32>
    %284 = vector.shape_cast %283 : vector<1x8x128xf32> to vector<8x128xf32>
    %285 = vector.shape_cast %281 : vector<8x128xf32> to vector<1x8x128xf32>
    tpu.vector_store %arg3[%282, %c0_68, %c0_69], %285 {strides = array<i32>} : memref<8x8x128xf32, #tpu.memory_space<vmem>>, vector<1x8x128xf32>,
    %c8_i32 = arith.constant 8 : i32
    %c0_70 = arith.constant 0 : index
    %c0_71 = arith.constant 0 : index
    %286 = vector.load %arg6[%c0_70, %c0_71] : memref<8x128xf32, #tpu.memory_space<vmem>>, vector<8x128xf32>
    tpu.vector_store %arg6[%c0_70, %c0_71], %281 {strides = array<i32>} : memref<8x128xf32, #tpu.memory_space<vmem>>, vector<8x128xf32>,
    %c0_72 = arith.constant 0 : index
    %c0_73 = arith.constant 0 : index
    %287 = vector.load %arg7[%c0_72, %c0_73] : memref<8x128xf32, #tpu.memory_space<vmem>>, vector<8x128xf32>
    tpu.vector_store %arg7[%c0_72, %c0_73], %279 {strides = array<i32>} : memref<8x128xf32, #tpu.memory_space<vmem>>, vector<8x128xf32>,
    %c0_i32_74 = arith.constant 0 : i32
    %288 = arith.cmpi eq, %arg0, %c0_i32_74 : i32
    %289 = arith.extui %288 : i1 to i32
    %c0_i32_75 = arith.constant 0 : i32
    %290 = arith.cmpi ne, %289, %c0_i32_75 : i32
    scf.if %290 {
      %c0_76 = arith.constant 0 : index
      %c0_77 = arith.constant 0 : index
      %291 = vector.load %arg4[%c0_76, %c0_77] : memref<8x128xf32, #tpu.memory_space<vmem>>, vector<8x128xf32>
      tpu.vector_store %arg4[%c0_76, %c0_77], %281 {strides = array<i32>} : memref<8x128xf32, #tpu.memory_space<vmem>>, vector<8x128xf32>,
      %c0_78 = arith.constant 0 : index
      %c0_79 = arith.constant 0 : index
      %292 = vector.load %arg5[%c0_78, %c0_79] : memref<8x128xf32, #tpu.memory_space<vmem>>, vector<8x128xf32>
      tpu.vector_store %arg5[%c0_78, %c0_79], %279 {strides = array<i32>} : memref<8x128xf32, #tpu.memory_space<vmem>>, vector<8x128xf32>,
    } else {
    }
    return
  }
  func.func @transform_0(%arg0: i32) -> (i32, i32, i32) {
    %c0_i32 = arith.constant 0 : i32
    %c0_i32_0 = arith.constant 0 : i32
    %c0_i32_1 = arith.constant 0 : i32
    return %arg0, %c0_i32, %c0_i32_0 : i32, i32, i32
  }
  func.func @transform_1(%arg0: i32) -> (i32, i32) {
    %c0_i32 = arith.constant 0 : i32
    %c0_i32_0 = arith.constant 0 : i32
    %c0_i32_1 = arith.constant 0 : i32
    return %c0_i32, %c0_i32_0 : i32, i32
  }
  func.func @transform_2(%arg0: i32) -> (i32, i32, i32) {
    %c0_i32 = arith.constant 0 : i32
    %c0_i32_0 = arith.constant 0 : i32
    %c0_i32_1 = arith.constant 0 : i32
    return %arg0, %c0_i32, %c0_i32_0 : i32, i32, i32
  }
  func.func @transform_3(%arg0: i32) -> (i32, i32) {
    %c0_i32 = arith.constant 0 : i32
    %c0_i32_0 = arith.constant 0 : i32
    %c0_i32_1 = arith.constant 0 : i32
    return %c0_i32, %c0_i32_0 : i32, i32
  }
  func.func @transform_4(%arg0: i32) -> (i32, i32) {
    %c0_i32 = arith.constant 0 : i32
    %c0_i32_0 = arith.constant 0 : i32
    %c0_i32_1 = arith.constant 0 : i32
    return %c0_i32, %c0_i32_0 : i32, i32
  }
}

module attributes {stable_mosaic.version = 11 : i64} {
  func.func @_matmul_bias_kernel(%arg0: i32, %arg1: i32, %arg2: i32, %arg3: memref<16x128xbf16, #tpu.memory_space<vmem>>, %arg4: memref<128x256xbf16, #tpu.memory_space<vmem>>, %arg5: memref<1x256xf32, #tpu.memory_space<vmem>>, %arg6: memref<16x256xf32, #tpu.memory_space<vmem>>, %arg7: memref<16x256xf32, #tpu.memory_space<vmem>>) attributes {dimension_semantics = [#tpu.dimension_semantics<parallel>, #tpu.dimension_semantics<parallel>, #tpu.dimension_semantics<arbitrary>], iteration_bounds = array<i64: 1, 1, 1>, scalar_prefetch = 0 : i64, scratch_operands = 1 : i64, tpu.core_type = #tpu.core_type<tc>, window_params = [{transform_indices = @transform_0, window_bounds = array<i64: 16, 128>}, {transform_indices = @transform_1, window_bounds = array<i64: 128, 256>}, {transform_indices = @transform_2, window_bounds = array<i64: 1, 256>}, {transform_indices = @transform_3, window_bounds = array<i64: 16, 256>}]} {
    %c0_i32 = arith.constant 0 : i32
    %0 = arith.cmpi eq, %arg2, %c0_i32 : i32
    %1 = arith.extui %0 : i1 to i32
    %c0_i32_0 = arith.constant 0 : i32
    %2 = arith.cmpi ne, %1, %c0_i32_0 : i32
    scf.if %2 {
      %cst_10 = arith.constant 0.000000e+00 : f32
      %12 = vector.broadcast %cst_10 : f32 to vector<16x256xf32>
      %c0_11 = arith.constant 0 : index
      %c0_12 = arith.constant 0 : index
      %13 = vector.load %arg7[%c0_11, %c0_12] : memref<16x256xf32, #tpu.memory_space<vmem>>, vector<16x256xf32>
      tpu.vector_store %arg7[%c0_11, %c0_12], %12 {strides = array<i32>} : memref<16x256xf32, #tpu.memory_space<vmem>>, vector<16x256xf32>,
    } else {
    }
    %c0 = arith.constant 0 : index
    %c0_1 = arith.constant 0 : index
    %3 = vector.load %arg7[%c0, %c0_1] : memref<16x256xf32, #tpu.memory_space<vmem>>, vector<16x256xf32>
    %c0_2 = arith.constant 0 : index
    %c0_3 = arith.constant 0 : index
    %4 = vector.load %arg3[%c0_2, %c0_3] : memref<16x128xbf16, #tpu.memory_space<vmem>>, vector<16x128xbf16>
    %c0_4 = arith.constant 0 : index
    %c0_5 = arith.constant 0 : index
    %5 = vector.load %arg4[%c0_4, %c0_5] : memref<128x256xbf16, #tpu.memory_space<vmem>>, vector<128x256xbf16>
    %cst = arith.constant dense<0.000000e+00> : vector<16x256xf32>
    %6 = tpu.matmul %4, %5, %cst {dimension_numbers = #tpu.dot_dimension_numbers<[1], [0], [0], [1], [0, 0, 1, 1], [], []>} : vector<16x128xbf16>, vector<128x256xbf16>, vector<16x256xf32> -> vector<16x256xf32>
    %7 = arith.addf %3, %6 : vector<16x256xf32>
    %c0_6 = arith.constant 0 : index
    %c0_7 = arith.constant 0 : index
    %8 = vector.load %arg7[%c0_6, %c0_7] : memref<16x256xf32, #tpu.memory_space<vmem>>, vector<16x256xf32>
    tpu.vector_store %arg7[%c0_6, %c0_7], %7 {strides = array<i32>} : memref<16x256xf32, #tpu.memory_space<vmem>>, vector<16x256xf32>,
    %c0_i32_8 = arith.constant 0 : i32
    %9 = arith.cmpi eq, %arg2, %c0_i32_8 : i32
    %10 = arith.extui %9 : i1 to i32
    %c0_i32_9 = arith.constant 0 : i32
    %11 = arith.cmpi ne, %10, %c0_i32_9 : i32
    scf.if %11 {
      %c0_10 = arith.constant 0 : index
      %c0_11 = arith.constant 0 : index
      %12 = vector.load %arg7[%c0_10, %c0_11] : memref<16x256xf32, #tpu.memory_space<vmem>>, vector<16x256xf32>
      %c0_12 = arith.constant 0 : index
      %c0_13 = arith.constant 0 : index
      %13 = vector.load %arg5[%c0_12, %c0_13] : memref<1x256xf32, #tpu.memory_space<vmem>>, vector<1x256xf32>
      %14 = vector.broadcast %13 : vector<1x256xf32> to vector<16x256xf32>
      %15 = arith.addf %12, %14 : vector<16x256xf32>
      %c0_14 = arith.constant 0 : index
      %c0_15 = arith.constant 0 : index
      %16 = vector.load %arg6[%c0_14, %c0_15] : memref<16x256xf32, #tpu.memory_space<vmem>>, vector<16x256xf32>
      tpu.vector_store %arg6[%c0_14, %c0_15], %15 {strides = array<i32>} : memref<16x256xf32, #tpu.memory_space<vmem>>, vector<16x256xf32>,
    } else {
    }
    return
  }
  func.func @transform_0(%arg0: i32, %arg1: i32, %arg2: i32) -> (i32, i32) {
    %c0_i32 = arith.constant 0 : i32
    return %arg0, %arg2 : i32, i32
  }
  func.func @transform_1(%arg0: i32, %arg1: i32, %arg2: i32) -> (i32, i32) {
    %c0_i32 = arith.constant 0 : i32
    return %arg2, %arg1 : i32, i32
  }
  func.func @transform_2(%arg0: i32, %arg1: i32, %arg2: i32) -> (i32, i32) {
    %c0_i32 = arith.constant 0 : i32
    %c0_i32_0 = arith.constant 0 : i32
    return %c0_i32, %arg1 : i32, i32
  }
  func.func @transform_3(%arg0: i32, %arg1: i32, %arg2: i32) -> (i32, i32) {
    %c0_i32 = arith.constant 0 : i32
    return %arg0, %arg1 : i32, i32
  }
}

</mosaic_0001>

<llo_original>
// kernel: lstm_model_forward.9
$region0: #{lstm_model_forward.9}
  #allocation0 [shape = 'u32[]', space=smem, size = 0x4, offset = 0x4, fixed_abs, tag = 'smem constant byte address 0x4 - core index']
  #allocation1 [shape = 'u32[144,128]{1,0:T(1,128)}', space=vmem, size = 0x12000, scoped, tag = 'internal scratch']
  #allocation2 [shape = 'f32[16,256]{1,0:T(8,128)}', space=vmem, size = 0x4000, scoped, tag = 'scratch operand']
  %s0 = inlined_call_operand.vmem [shape: bf16[16,128], index: 0, kind: input, shape index: {}]
  %s1 = inlined_call_operand.vmem [shape: bf16[128,256], index: 1, kind: input, shape index: {}]
  %s2 = inlined_call_operand.vmem [shape: f32[1,256], index: 2, kind: input, shape index: {}]
  %s3 = inlined_call_operand.hbm [shape: f32[16,256], index: 3, kind: output, shape index: {}]
  %s4 = sld [smem:[#allocation0]]
  $region30: #{lstm_model_forward.9} parent=0
    _
  %s6 = ssub.s32 1, %s4
  %s7 = scalar_select 0, %s6, %s4
  $region1: #{lstm_model_forward.9} parent=0
    #allocation3 [shape = 'u8[16384]{0}', space=vmem, size = 0x4000, scoped, tag = 'output window, operand 0, single buffered']
    #allocation4 [shape = 's32[1]{0}', space=sflag, size = 0x4, scoped, tag = 'scoped memory for lstm_model_forward.9']
    %8 = vsyncpa [#allocation4], 0
    // Predicated region
    $region2: #{lstm_model_forward.9} parent=1 // pred_check
      _
    $region3: #{lstm_model_forward.9} parent=1 // pred_check_branch
      %10 = sbr.rel (0) target = $region5
    $region4: #{lstm_model_forward.9} parent=1 // pred_region
      _
    $region5: #{lstm_model_forward.9} parent=1 // pred_fallthru
      _
    // Predicated region
    $region6: #{lstm_model_forward.9} parent=1 // pred_check
      _
    $region7: #{lstm_model_forward.9} parent=1 // pred_check_branch
      %12 = sbr.rel (0) target = $region9
    $region8: #{lstm_model_forward.9} parent=1 // pred_region
      _
    $region9: #{lstm_model_forward.9} parent=1 // pred_fallthru
      _
    // Predicated region
    $region10: #{lstm_model_forward.9} parent=1 // pred_check
      _
    $region11: #{lstm_model_forward.9} parent=1 // pred_check_branch
      %14 = sbr.rel (0) target = $region13
    $region12: #{lstm_model_forward.9} parent=1 // pred_region
      _
    $region13: #{lstm_model_forward.9} parent=1 // pred_fallthru
      _
    %p16 = scmp.eq.s32.totalorder 0, 0
    // Predicated region
    $region14: #{lstm_model_forward.9} parent=1 // pred_check
      %p17 = pneg %p16
    $region15: #{lstm_model_forward.9} parent=1 // pred_check_branch
      %19 = sbr.rel (%p17) target = $region17
    $region16: #{lstm_model_forward.9} parent=1 // pred_region
      %20 = vst [vmem:[#allocation2] sm:$0xff] 0.0
      %21 = vst [vmem:[#allocation2 + $0x8] sm:$0xff] 0.0
      %22 = vst [vmem:[#allocation2 + $0x10] sm:$0xff] 0.0
      %23 = vst [vmem:[#allocation2 + $0x18] sm:$0xff] 0.0
    $region17: #{lstm_model_forward.9} parent=1 // pred_fallthru
      _
    %v24 = vld [vmem:[#allocation2] sm:$0xff]
    %v25 = vld [vmem:[#allocation2 + $0x8] sm:$0xff]
    %v26 = vld [vmem:[#allocation2 + $0x10] sm:$0xff]
    %v27 = vld [vmem:[#allocation2 + $0x18] sm:$0xff]
    %v28 = vld [vmem:[%s0] sm:$0xf]
    %v29 = vld [vmem:[%s0 + $0x4] sm:$0xf]
    %v30 = vld [vmem:[%s1] sm:$0xff]
    %v31 = vld [vmem:[%s1 + $0x8] sm:$0xff]
    %v32 = vld [vmem:[%s1 + $0x10] sm:$0xff]
    %v33 = vld [vmem:[%s1 + $0x18] sm:$0xff]
    %v34 = vld [vmem:[%s1 + $0x20] sm:$0xff]
    %v35 = vld [vmem:[%s1 + $0x28] sm:$0xff]
    %v36 = vld [vmem:[%s1 + $0x30] sm:$0xff]
    %v37 = vld [vmem:[%s1 + $0x38] sm:$0xff]
    %v38 = vld [vmem:[%s1 + $0x40] sm:$0xff]
    %v39 = vld [vmem:[%s1 + $0x48] sm:$0xff]
    %v40 = vld [vmem:[%s1 + $0x50] sm:$0xff]
    %v41 = vld [vmem:[%s1 + $0x58] sm:$0xff]
    %v42 = vld [vmem:[%s1 + $0x60] sm:$0xff]
    %v43 = vld [vmem:[%s1 + $0x68] sm:$0xff]
    %v44 = vld [vmem:[%s1 + $0x70] sm:$0xff]
    %v45 = vld [vmem:[%s1 + $0x78] sm:$0xff]
    %v48 = vunpack.c.l.b16 %v28
    %v49 = vunpack.c.l.b16 %v29
    %v50 = vpack.c.b16 %v49, %v48
    %v68 = vunpack.c.l.b16 %v30
    %v69 = vunpack.c.h.b16 %v30
    %v70 = vunpack.c.l.b16 %v31
    %v71 = vunpack.c.h.b16 %v31
    %v72 = vunpack.c.l.b16 %v32
    %v73 = vunpack.c.h.b16 %v32
    %v74 = vunpack.c.l.b16 %v33
    %v75 = vunpack.c.h.b16 %v33
    %v76 = vunpack.c.l.b16 %v34
    %v77 = vunpack.c.h.b16 %v34
    %v78 = vunpack.c.l.b16 %v35
    %v79 = vunpack.c.h.b16 %v35
    %v80 = vunpack.c.l.b16 %v36
    %v81 = vunpack.c.h.b16 %v36
    %v82 = vunpack.c.l.b16 %v37
    %v83 = vunpack.c.h.b16 %v37
    %v84 = vunpack.c.l.b16 %v38
    %v85 = vunpack.c.h.b16 %v38
    %v86 = vunpack.c.l.b16 %v39
    %v87 = vunpack.c.h.b16 %v39
    %v88 = vunpack.c.l.b16 %v40
    %v89 = vunpack.c.h.b16 %v40
    %v90 = vunpack.c.l.b16 %v41
    %v91 = vunpack.c.h.b16 %v41
    %v92 = vunpack.c.l.b16 %v42
    %v93 = vunpack.c.h.b16 %v42
    %v94 = vunpack.c.l.b16 %v43
    %v95 = vunpack.c.h.b16 %v43
    %v96 = vunpack.c.l.b16 %v44
    %v97 = vunpack.c.h.b16 %v44
    %v98 = vunpack.c.l.b16 %v45
    %v99 = vunpack.c.h.b16 %v45
    %v100 = vpack.c.b16 %v70, %v68
    %v101 = vpack.c.b16 %v71, %v69
    %v102 = vpack.c.b16 %v74, %v72
    %v103 = vpack.c.b16 %v75, %v73
    %v104 = vpack.c.b16 %v78, %v76
    %v105 = vpack.c.b16 %v79, %v77
    %v106 = vpack.c.b16 %v82, %v80
    %v107 = vpack.c.b16 %v83, %v81
    %v108 = vpack.c.b16 %v86, %v84
    %v109 = vpack.c.b16 %v87, %v85
    %v110 = vpack.c.b16 %v90, %v88
    %v111 = vpack.c.b16 %v91, %v89
    %v112 = vpack.c.b16 %v94, %v92
    %v113 = vpack.c.b16 %v95, %v93
    %v114 = vpack.c.b16 %v98, %v96
    %v115 = vpack.c.b16 %v99, %v97
    %132 = vmatprep.subr.bf16.mxu0 %v101
    %133 = vmatpush1.bf16.msra.mxu0 %v100
    %134 = vmatprep.subr.bf16.mxu0 %v103
    %135 = vmatpush1.bf16.msra.mxu0 %v102
    %136 = vmatprep.subr.bf16.mxu0 %v105
    %137 = vmatpush1.bf16.msra.mxu0 %v104
    %138 = vmatprep.subr.bf16.mxu0 %v107
    %139 = vmatpush1.bf16.msra.mxu0 %v106
    %140 = vmatprep.subr.bf16.mxu0 %v109
    %141 = vmatpush1.bf16.msra.mxu0 %v108
    %142 = vmatprep.subr.bf16.mxu0 %v111
    %143 = vmatpush1.bf16.msra.mxu0 %v110
    %144 = vmatprep.subr.bf16.mxu0 %v113
    %145 = vmatpush1.bf16.msra.mxu0 %v112
    %146 = vmatprep.subr.bf16.mxu0 %v115
    %147 = vmatpush1.bf16.msra.mxu0 %v114
    %148 = vmatprep.subr.bf16.mxu0 0
    %149 = vmatpush1.bf16.msra.mxu0 0
    %150 = vmatprep.subr.bf16.mxu0 0
    %151 = vmatpush1.bf16.msra.mxu0 0
    %152 = vmatprep.subr.bf16.mxu0 0
    %153 = vmatpush1.bf16.msra.mxu0 0
    %154 = vmatprep.subr.bf16.mxu0 0
    %155 = vmatpush1.bf16.msra.mxu0 0
    %156 = vmatprep.subr.bf16.mxu0 0
    %157 = vmatpush1.bf16.msra.mxu0 0
    %158 = vmatprep.subr.bf16.mxu0 0
    %159 = vmatpush1.bf16.msra.mxu0 0
    %160 = vmatprep.subr.bf16.mxu0 0
    %161 = vmatpush1.bf16.msra.mxu0 0
    %162 = vmatprep.subr.bf16.mxu0 0
    %163 = vmatpush1.bf16.msra.mxu0 0
    %164 = vmatprep.mubr.bf16.mxu0 0
    %165 = vmatmul.mubr.bf16.gmra.mrb[0].mxu0 %v50
    %v166 = vpop.f32.mrb[0].mxu0
    %v167 = vadd.f32 0.0, %v166
    %v168 = vpop.f32.mrb[0].mxu0
    %v169 = vadd.f32 0.0, %v168
    %v170 = vpop.f32.mrb[0].mxu0
    %v171 = vadd.f32 0.0, %v170
    %v172 = vpop.f32.mrb[0].mxu0
    %v173 = vadd.f32 0.0, %v172
    %174 = vdwg.mxu0
    %v175 = vadd.f32 %v24, %v167
    %v176 = vadd.f32 %v25, %v169
    %v177 = vadd.f32 %v26, %v171
    %v178 = vadd.f32 %v27, %v173
    %179 = vst [vmem:[#allocation2] sm:$0xff] %v175
    %180 = vst [vmem:[#allocation2 + $0x8] sm:$0xff] %v176
    %181 = vst [vmem:[#allocation2 + $0x10] sm:$0xff] %v177
    %182 = vst [vmem:[#allocation2 + $0x18] sm:$0xff] %v178
    // Predicated region
    $region18: #{lstm_model_forward.9} parent=1 // pred_check
      %p183 = pneg %p16
    $region19: #{lstm_model_forward.9} parent=1 // pred_check_branch
      %185 = sbr.rel (%p183) target = $region21
    $region20: #{lstm_model_forward.9} parent=1 // pred_region
      %v186 = vld [vmem:[#allocation2] sm:$0xff]
      %v187 = vld [vmem:[#allocation2 + $0x8] sm:$0xff]
      %v188 = vld [vmem:[#allocation2 + $0x10] sm:$0xff]
      %v189 = vld [vmem:[#allocation2 + $0x18] sm:$0xff]
      %v190 = vld [vmem:[%s2] sm:$0x3]
      %v192 = vlaneseq
      %v193 = vshrl.u32 %v192, 7
      %v194 = vsub.s32 0, %v193
      %v195 = vrot.slane %v190, %v194
      %v196 = vlaneseq
      %v197 = vshrl.u32 %v196, 7
      %v198 = vsub.s32 1, %v197
      %v199 = vrot.slane %v190, %v198
      %v202 = vadd.f32 %v186, %v195
      %v203 = vadd.f32 %v187, %v199
      %v204 = vadd.f32 %v188, %v195
      %v205 = vadd.f32 %v189, %v199
      %206 = vst [vmem:[#allocation3] sm:$0xff] %v202
      %207 = vst [vmem:[#allocation3 + $0x8] sm:$0xff] %v203
      %208 = vst [vmem:[#allocation3 + $0x10] sm:$0xff] %v204
      %209 = vst [vmem:[#allocation3 + $0x18] sm:$0xff] %v205
    $region21: #{lstm_model_forward.9} parent=1 // pred_fallthru
      _
    // Predicated region
    $region22: #{lstm_model_forward.9} parent=1 // pred_check
      _
    $region23: #{lstm_model_forward.9} parent=1 // pred_check_branch
      %211 = sbr.rel (0) target = $region25
    $region24: #{lstm_model_forward.9} parent=1 // pred_region
      %s213 = ssub.s32 512, 512
      %214 = vsyncadd [#allocation4], %s213
      %s215 = sshll.u32 [#allocation3], 4
      %s216 = int_to_ptr.vmem [resolvable:$true] %s215
      %221 = dma.vmem_to_hbm [thread:$0]  %s216, 512, %s3, [#allocation4], 256, 256, 16
    $region25: #{lstm_model_forward.9} parent=1 // pred_fallthru
      _
    // Predicated region
    $region26: #{lstm_model_forward.9} parent=1 // pred_check
      _
    $region27: #{lstm_model_forward.9} parent=1 // pred_check_branch
      %223 = sbr.rel (0) target = $region29
    $region28: #{lstm_model_forward.9} parent=1 // pred_region
      %224 = dma.done [#allocation4], 512
    $region29: #{lstm_model_forward.9} parent=1 // pred_fallthru
      _
    %225 = vsyncpa [#allocation4], 1

// kernel: lstm_model_forward.5
$region0: #{lstm_model_forward.5}
  #allocation0 [shape = 'u32[]', space=smem, size = 0x4, offset = 0x4, fixed_abs, tag = 'smem constant byte address 0x4 - core index']
  #allocation1 [shape = 'u32[144,128]{1,0:T(1,128)}', space=vmem, size = 0x12000, scoped, tag = 'internal scratch']
  #allocation2 [shape = 'f32[64,512]{1,0:T(8,128)}', space=vmem, size = 0x20000, scoped, tag = 'scratch operand']
  %s0 = inlined_call_operand.vmem [shape: bf16[64,128], index: 0, kind: input, shape index: {}]
  %s1 = inlined_call_operand.vmem [shape: bf16[128,512], index: 1, kind: input, shape index: {}]
  %s2 = inlined_call_operand.vmem [shape: f32[1,512], index: 2, kind: input, shape index: {}]
  %s3 = inlined_call_operand.vmem [shape: f32[64,512], index: 3, kind: output, shape index: {}]
  %s4 = sld [smem:[#allocation0]]
  $region30: #{lstm_model_forward.5} parent=0
    _
  %s6 = ssub.s32 1, %s4
  %s7 = scalar_select 0, %s6, %s4
  // Predicated region
  $region2: #{lstm_model_forward.5} parent=0 // pred_check
    _
  $region3: #{lstm_model_forward.5} parent=0 // pred_check_branch
    %9 = sbr.rel (0) target = $region5
  $region4: #{lstm_model_forward.5} parent=0 // pred_region
    _
  $region5: #{lstm_model_forward.5} parent=0 // pred_fallthru
    _
  // Predicated region
  $region6: #{lstm_model_forward.5} parent=0 // pred_check
    _
  $region7: #{lstm_model_forward.5} parent=0 // pred_check_branch
    %11 = sbr.rel (0) target = $region9
  $region8: #{lstm_model_forward.5} parent=0 // pred_region
    _
  $region9: #{lstm_model_forward.5} parent=0 // pred_fallthru
    _
  // Predicated region
  $region10: #{lstm_model_forward.5} parent=0 // pred_check
    _
  $region11: #{lstm_model_forward.5} parent=0 // pred_check_branch
    %13 = sbr.rel (0) target = $region13
  $region12: #{lstm_model_forward.5} parent=0 // pred_region
    _
  $region13: #{lstm_model_forward.5} parent=0 // pred_fallthru
    _
  %p15 = scmp.eq.s32.totalorder 0, 0
  // Predicated region
  $region14: #{lstm_model_forward.5} parent=0 // pred_check
    %p16 = pneg %p15
  $region15: #{lstm_model_forward.5} parent=0 // pred_check_branch
    %18 = sbr.rel (%p16) target = $region17
  $region16: #{lstm_model_forward.5} parent=0 // pred_region
    %19 = vst [vmem:[#allocation2] sm:$0xff] 0.0
    %20 = vst [vmem:[#allocation2 + $0x8] sm:$0xff] 0.0
    %21 = vst [vmem:[#allocation2 + $0x10] sm:$0xff] 0.0
    %22 = vst [vmem:[#allocation2 + $0x18] sm:$0xff] 0.0
    %23 = vst [vmem:[#allocation2 + $0x20] sm:$0xff] 0.0
    %24 = vst [vmem:[#allocation2 + $0x28] sm:$0xff] 0.0
    %25 = vst [vmem:[#allocation2 + $0x30] sm:$0xff] 0.0
    %26 = vst [vmem:[#allocation2 + $0x38] sm:$0xff] 0.0
    %27 = vst [vmem:[#allocation2 + $0x40] sm:$0xff] 0.0
    %28 = vst [vmem:[#allocation2 + $0x48] sm:$0xff] 0.0
    %29 = vst [vmem:[#allocation2 + $0x50] sm:$0xff] 0.0
    %30 = vst [vmem:[#allocation2 + $0x58] sm:$0xff] 0.0
    %31 = vst [vmem:[#allocation2 + $0x60] sm:$0xff] 0.0
    %32 = vst [vmem:[#allocation2 + $0x68] sm:$0xff] 0.0
    %33 = vst [vmem:[#allocation2 + $0x70] sm:$0xff] 0.0
    %34 = vst [vmem:[#allocation2 + $0x78] sm:$0xff] 0.0
    %35 = vst [vmem:[#allocation2 + $0x80] sm:$0xff] 0.0
    %36 = vst [vmem:[#allocation2 + $0x88] sm:$0xff] 0.0
    %37 = vst [vmem:[#allocation2 + $0x90] sm:$0xff] 0.0
    %38 = vst [vmem:[#allocation2 + $0x98] sm:$0xff] 0.0
    %39 = vst [vmem:[#allocation2 + $0xa0] sm:$0xff] 0.0
    %40 = vst [vmem:[#allocation2 + $0xa8] sm:$0xff] 0.0
    %41 = vst [vmem:[#allocation2 + $0xb0] sm:$0xff] 0.0
    %42 = vst [vmem:[#allocation2 + $0xb8] sm:$0xff] 0.0
    %43 = vst [vmem:[#allocation2 + $0xc0] sm:$0xff] 0.0
    %44 = vst [vmem:[#allocation2 + $0xc8] sm:$0xff] 0.0
    %45 = vst [vmem:[#allocation2 + $0xd0] sm:$0xff] 0.0
    %46 = vst [vmem:[#allocation2 + $0xd8] sm:$0xff] 0.0
    %47 = vst [vmem:[#allocation2 + $0xe0] sm:$0xff] 0.0
    %48 = vst [vmem:[#allocation2 + $0xe8] sm:$0xff] 0.0
    %49 = vst [vmem:[#allocation2 + $0xf0] sm:$0xff] 0.0
    %50 = vst [vmem:[#allocation2 + $0xf8] sm:$0xff] 0.0
  $region17: #{lstm_model_forward.5} parent=0 // pred_fallthru
    _
  %v51 = vld [vmem:[#allocation2] sm:$0xff]
  %v52 = vld [vmem:[#allocation2 + $0x8] sm:$0xff]
  %v53 = vld [vmem:[#allocation2 + $0x10] sm:$0xff]
  %v54 = vld [vmem:[#allocation2 + $0x18] sm:$0xff]
  %v55 = vld [vmem:[#allocation2 + $0x20] sm:$0xff]
  %v56 = vld [vmem:[#allocation2 + $0x28] sm:$0xff]
  %v57 = vld [vmem:[#allocation2 + $0x30] sm:$0xff]
  %v58 = vld [vmem:[#allocation2 + $0x38] sm:$0xff]
  %v59 = vld [vmem:[#allocation2 + $0x40] sm:$0xff]
  %v60 = vld [vmem:[#allocation2 + $0x48] sm:$0xff]
  %v61 = vld [vmem:[#allocation2 + $0x50] sm:$0xff]
  %v62 = vld [vmem:[#allocation2 + $0x58] sm:$0xff]
  %v63 = vld [vmem:[#allocation2 + $0x60] sm:$0xff]
  %v64 = vld [vmem:[#allocation2 + $0x68] sm:$0xff]
  %v65 = vld [vmem:[#allocation2 + $0x70] sm:$0xff]
  %v66 = vld [vmem:[#allocation2 + $0x78] sm:$0xff]
  %v67 = vld [vmem:[#allocation2 + $0x80] sm:$0xff]
  %v68 = vld [vmem:[#allocation2 + $0x88] sm:$0xff]
  %v69 = vld [vmem:[#allocation2 + $0x90] sm:$0xff]
  %v70 = vld [vmem:[#allocation2 + $0x98] sm:$0xff]
  %v71 = vld [vmem:[#allocation2 + $0xa0] sm:$0xff]
  %v72 = vld [vmem:[#allocation2 + $0xa8] sm:$0xff]
  %v73 = vld [vmem:[#allocation2 + $0xb0] sm:$0xff]
  %v74 = vld [vmem:[#allocation2 + $0xb8] sm:$0xff]
  %v75 = vld [vmem:[#allocation2 + $0xc0] sm:$0xff]
  %v76 = vld [vmem:[#allocation2 + $0xc8] sm:$0xff]
  %v77 = vld [vmem:[#allocation2 + $0xd0] sm:$0xff]
  %v78 = vld [vmem:[#allocation2 + $0xd8] sm:$0xff]
  %v79 = vld [vmem:[#allocation2 + $0xe0] sm:$0xff]
  %v80 = vld [vmem:[#allocation2 + $0xe8] sm:$0xff]
  %v81 = vld [vmem:[#allocation2 + $0xf0] sm:$0xff]
  %v82 = vld [vmem:[#allocation2 + $0xf8] sm:$0xff]
  %v83 = vld [vmem:[%s0] sm:$0xf]
  %v84 = vld [vmem:[%s0 + $0x4] sm:$0xf]
  %v85 = vld [vmem:[%s0 + $0x8] sm:$0xf]
  %v86 = vld [vmem:[%s0 + $0xc] sm:$0xf]
  %v87 = vld [vmem:[%s0 + $0x10] sm:$0xf]
  %v88 = vld [vmem:[%s0 + $0x14] sm:$0xf]
  %v89 = vld [vmem:[%s0 + $0x18] sm:$0xf]
  %v90 = vld [vmem:[%s0 + $0x1c] sm:$0xf]
  %v91 = vld [vmem:[%s1] sm:$0xff]
  %v92 = vld [vmem:[%s1 + $0x8] sm:$0xff]
  %v93 = vld [vmem:[%s1 + $0x10] sm:$0xff]
  %v94 = vld [vmem:[%s1 + $0x18] sm:$0xff]
  %v95 = vld [vmem:[%s1 + $0x20] sm:$0xff]
  %v96 = vld [vmem:[%s1 + $0x28] sm:$0xff]
  %v97 = vld [vmem:[%s1 + $0x30] sm:$0xff]
  %v98 = vld [vmem:[%s1 + $0x38] sm:$0xff]
  %v99 = vld [vmem:[%s1 + $0x40] sm:$0xff]
  %v100 = vld [vmem:[%s1 + $0x48] sm:$0xff]
  %v101 = vld [vmem:[%s1 + $0x50] sm:$0xff]
  %v102 = vld [vmem:[%s1 + $0x58] sm:$0xff]
  %v103 = vld [vmem:[%s1 + $0x60] sm:$0xff]
  %v104 = vld [vmem:[%s1 + $0x68] sm:$0xff]
  %v105 = vld [vmem:[%s1 + $0x70] sm:$0xff]
  %v106 = vld [vmem:[%s1 + $0x78] sm:$0xff]
  %v107 = vld [vmem:[%s1 + $0x80] sm:$0xff]
  %v108 = vld [vmem:[%s1 + $0x88] sm:$0xff]
  %v109 = vld [vmem:[%s1 + $0x90] sm:$0xff]
  %v110 = vld [vmem:[%s1 + $0x98] sm:$0xff]
  %v111 = vld [vmem:[%s1 + $0xa0] sm:$0xff]
  %v112 = vld [vmem:[%s1 + $0xa8] sm:$0xff]
  %v113 = vld [vmem:[%s1 + $0xb0] sm:$0xff]
  %v114 = vld [vmem:[%s1 + $0xb8] sm:$0xff]
  %v115 = vld [vmem:[%s1 + $0xc0] sm:$0xff]
  %v116 = vld [vmem:[%s1 + $0xc8] sm:$0xff]
  %v117 = vld [vmem:[%s1 + $0xd0] sm:$0xff]
  %v118 = vld [vmem:[%s1 + $0xd8] sm:$0xff]
  %v119 = vld [vmem:[%s1 + $0xe0] sm:$0xff]
  %v120 = vld [vmem:[%s1 + $0xe8] sm:$0xff]
  %v121 = vld [vmem:[%s1 + $0xf0] sm:$0xff]
  %v122 = vld [vmem:[%s1 + $0xf8] sm:$0xff]
  %v131 = vunpack.c.l.b16 %v83
  %v132 = vunpack.c.l.b16 %v84
  %v133 = vunpack.c.l.b16 %v85
  %v134 = vunpack.c.l.b16 %v86
  %v135 = vunpack.c.l.b16 %v87
  %v136 = vunpack.c.l.b16 %v88
  %v137 = vunpack.c.l.b16 %v89
  %v138 = vunpack.c.l.b16 %v90
  %v139 = vpack.c.b16 %v132, %v131
  %v140 = vpack.c.b16 %v134, %v133
  %v141 = vpack.c.b16 %v136, %v135
  %v142 = vpack.c.b16 %v138, %v137
  %v179 = vunpack.c.l.b16 %v91
  %v180 = vunpack.c.h.b16 %v91
  %v181 = vunpack.c.l.b16 %v92
  %v182 = vunpack.c.h.b16 %v92
  %v183 = vunpack.c.l.b16 %v93
  %v184 = vunpack.c.h.b16 %v93
  %v185 = vunpack.c.l.b16 %v94
  %v186 = vunpack.c.h.b16 %v94
  %v187 = vunpack.c.l.b16 %v95
  %v188 = vunpack.c.h.b16 %v95
  %v189 = vunpack.c.l.b16 %v96
  %v190 = vunpack.c.h.b16 %v96
  %v191 = vunpack.c.l.b16 %v97
  %v192 = vunpack.c.h.b16 %v97
  %v193 = vunpack.c.l.b16 %v98
  %v194 = vunpack.c.h.b16 %v98
  %v195 = vunpack.c.l.b16 %v99
  %v196 = vunpack.c.h.b16 %v99
  %v197 = vunpack.c.l.b16 %v100
  %v198 = vunpack.c.h.b16 %v100
  %v199 = vunpack.c.l.b16 %v101
  %v200 = vunpack.c.h.b16 %v101
  %v201 = vunpack.c.l.b16 %v102
  %v202 = vunpack.c.h.b16 %v102
  %v203 = vunpack.c.l.b16 %v103
  %v204 = vunpack.c.h.b16 %v103
  %v205 = vunpack.c.l.b16 %v104
  %v206 = vunpack.c.h.b16 %v104
  %v207 = vunpack.c.l.b16 %v105
  %v208 = vunpack.c.h.b16 %v105
  %v209 = vunpack.c.l.b16 %v106
  %v210 = vunpack.c.h.b16 %v106
  %v211 = vunpack.c.l.b16 %v107
  %v212 = vunpack.c.h.b16 %v107
  %v213 = vunpack.c.l.b16 %v108
  %v214 = vunpack.c.h.b16 %v108
  %v215 = vunpack.c.l.b16 %v109
  %v216 = vunpack.c.h.b16 %v109
  %v217 = vunpack.c.l.b16 %v110
  %v218 = vunpack.c.h.b16 %v110
  %v219 = vunpack.c.l.b16 %v111
  %v220 = vunpack.c.h.b16 %v111
  %v221 = vunpack.c.l.b16 %v112
  %v222 = vunpack.c.h.b16 %v112
  %v223 = vunpack.c.l.b16 %v113
  %v224 = vunpack.c.h.b16 %v113
  %v225 = vunpack.c.l.b16 %v114
  %v226 = vunpack.c.h.b16 %v114
  %v227 = vunpack.c.l.b16 %v115
  %v228 = vunpack.c.h.b16 %v115
  %v229 = vunpack.c.l.b16 %v116
  %v230 = vunpack.c.h.b16 %v116
  %v231 = vunpack.c.l.b16 %v117
  %v232 = vunpack.c.h.b16 %v117
  %v233 = vunpack.c.l.b16 %v118
  %v234 = vunpack.c.h.b16 %v118
  %v235 = vunpack.c.l.b16 %v119
  %v236 = vunpack.c.h.b16 %v119
  %v237 = vunpack.c.l.b16 %v120
  %v238 = vunpack.c.h.b16 %v120
  %v239 = vunpack.c.l.b16 %v121
  %v240 = vunpack.c.h.b16 %v121
  %v241 = vunpack.c.l.b16 %v122
  %v242 = vunpack.c.h.b16 %v122
  %v243 = vpack.c.b16 %v183, %v179
  %v244 = vpack.c.b16 %v184, %v180
  %v245 = vpack.c.b16 %v185, %v181
  %v246 = vpack.c.b16 %v186, %v182
  %v247 = vpack.c.b16 %v191, %v187
  %v248 = vpack.c.b16 %v192, %v188
  %v249 = vpack.c.b16 %v193, %v189
  %v250 = vpack.c.b16 %v194, %v190
  %v251 = vpack.c.b16 %v199, %v195
  %v252 = vpack.c.b16 %v200, %v196
  %v253 = vpack.c.b16 %v201, %v197
  %v254 = vpack.c.b16 %v202, %v198
  %v255 = vpack.c.b16 %v207, %v203
  %v256 = vpack.c.b16 %v208, %v204
  %v257 = vpack.c.b16 %v209, %v205
  %v258 = vpack.c.b16 %v210, %v206
  %v259 = vpack.c.b16 %v215, %v211
  %v260 = vpack.c.b16 %v216, %v212
  %v261 = vpack.c.b16 %v217, %v213
  %v262 = vpack.c.b16 %v218, %v214
  %v263 = vpack.c.b16 %v223, %v219
  %v264 = vpack.c.b16 %v224, %v220
  %v265 = vpack.c.b16 %v225, %v221
  %v266 = vpack.c.b16 %v226, %v222
  %v267 = vpack.c.b16 %v231, %v227
  %v268 = vpack.c.b16 %v232, %v228
  %v269 = vpack.c.b16 %v233, %v229
  %v270 = vpack.c.b16 %v234, %v230
  %v271 = vpack.c.b16 %v239, %v235
  %v272 = vpack.c.b16 %v240, %v236
  %v273 = vpack.c.b16 %v241, %v237
  %v274 = vpack.c.b16 %v242, %v238
  %307 = vmatprep.subr.bf16.mxu0 %v244
  %308 = vmatpush1.bf16.msra.mxu0 %v243
  %309 = vmatprep.subr.bf16.mxu0 %v248
  %310 = vmatpush1.bf16.msra.mxu0 %v247
  %311 = vmatprep.subr.bf16.mxu0 %v252
  %312 = vmatpush1.bf16.msra.mxu0 %v251
  %313 = vmatprep.subr.bf16.mxu0 %v256
  %314 = vmatpush1.bf16.msra.mxu0 %v255
  %315 = vmatprep.subr.bf16.mxu0 %v260
  %316 = vmatpush1.bf16.msra.mxu0 %v259
  %317 = vmatprep.subr.bf16.mxu0 %v264
  %318 = vmatpush1.bf16.msra.mxu0 %v263
  %319 = vmatprep.subr.bf16.mxu0 %v268
  %320 = vmatpush1.bf16.msra.mxu0 %v267
  %321 = vmatprep.subr.bf16.mxu0 %v272
  %322 = vmatpush1.bf16.msra.mxu0 %v271
  %323 = vmatprep.subr.bf16.mxu0 0
  %324 = vmatpush1.bf16.msra.mxu0 0
  %325 = vmatprep.subr.bf16.mxu0 0
  %326 = vmatpush1.bf16.msra.mxu0 0
  %327 = vmatprep.subr.bf16.mxu0 0
  %328 = vmatpush1.bf16.msra.mxu0 0
  %329 = vmatprep.subr.bf16.mxu0 0
  %330 = vmatpush1.bf16.msra.mxu0 0
  %331 = vmatprep.subr.bf16.mxu0 0
  %332 = vmatpush1.bf16.msra.mxu0 0
  %333 = vmatprep.subr.bf16.mxu0 0
  %334 = vmatpush1.bf16.msra.mxu0 0
  %335 = vmatprep.subr.bf16.mxu0 0
  %336 = vmatpush1.bf16.msra.mxu0 0
  %337 = vmatprep.subr.bf16.mxu0 0
  %338 = vmatpush1.bf16.msra.mxu0 0
  %339 = vmatprep.mubr.bf16.mxu0 0
  %340 = vmatmul.mubr.bf16.gmra.mrb[0].mxu0 %v139
  %v341 = vpop.f32.mrb[0].mxu0
  %v342 = vadd.f32 0.0, %v341
  %v343 = vpop.f32.mrb[0].mxu0
  %v344 = vadd.f32 0.0, %v343
  %v345 = vpop.f32.mrb[0].mxu0
  %v346 = vadd.f32 0.0, %v345
  %v347 = vpop.f32.mrb[0].mxu0
  %v348 = vadd.f32 0.0, %v347
  %349 = vmatprep.mubr.bf16.mxu0 0
  %350 = vmatmul.mubr.bf16.gmra.mrb[0].mxu0 %v140
  %v351 = vpop.f32.mrb[0].mxu0
  %v352 = vadd.f32 0.0, %v351
  %v353 = vpop.f32.mrb[0].mxu0
  %v354 = vadd.f32 0.0, %v353
  %v355 = vpop.f32.mrb[0].mxu0
  %v356 = vadd.f32 0.0, %v355
  %v357 = vpop.f32.mrb[0].mxu0
  %v358 = vadd.f32 0.0, %v357
  %359 = vmatprep.mubr.bf16.mxu0 0
  %360 = vmatmul.mubr.bf16.gmra.mrb[0].mxu0 %v141
  %v361 = vpop.f32.mrb[0].mxu0
  %v362 = vadd.f32 0.0, %v361
  %v363 = vpop.f32.mrb[0].mxu0
  %v364 = vadd.f32 0.0, %v363
  %v365 = vpop.f32.mrb[0].mxu0
  %v366 = vadd.f32 0.0, %v365
  %v367 = vpop.f32.mrb[0].mxu0
  %v368 = vadd.f32 0.0, %v367
  %369 = vmatprep.mubr.bf16.mxu0 0
  %370 = vmatmul.mubr.bf16.gmra.mrb[0].mxu0 %v142
  %v371 = vpop.f32.mrb[0].mxu0
  %v372 = vadd.f32 0.0, %v371
  %v373 = vpop.f32.mrb[0].mxu0
  %v374 = vadd.f32 0.0, %v373
  %v375 = vpop.f32.mrb[0].mxu0
  %v376 = vadd.f32 0.0, %v375
  %v377 = vpop.f32.mrb[0].mxu0
  %v378 = vadd.f32 0.0, %v377
  %379 = vdwg.mxu0
  %380 = vmatprep.subr.bf16.mxu0 %v246
  %381 = vmatpush1.bf16.msra.mxu0 %v245
  %382 = vmatprep.subr.bf16.mxu0 %v250
  %383 = vmatpush1.bf16.msra.mxu0 %v249
  %384 = vmatprep.subr.bf16.mxu0 %v254
  %385 = vmatpush1.bf16.msra.mxu0 %v253
  %386 = vmatprep.subr.bf16.mxu0 %v258
  %387 = vmatpush1.bf16.msra.mxu0 %v257
  %388 = vmatprep.subr.bf16.mxu0 %v262
  %389 = vmatpush1.bf16.msra.mxu0 %v261
  %390 = vmatprep.subr.bf16.mxu0 %v266
  %391 = vmatpush1.bf16.msra.mxu0 %v265
  %392 = vmatprep.subr.bf16.mxu0 %v270
  %393 = vmatpush1.bf16.msra.mxu0 %v269
  %394 = vmatprep.subr.bf16.mxu0 %v274
  %395 = vmatpush1.bf16.msra.mxu0 %v273
  %396 = vmatprep.subr.bf16.mxu0 0
  %397 = vmatpush1.bf16.msra.mxu0 0
  %398 = vmatprep.subr.bf16.mxu0 0
  %399 = vmatpush1.bf16.msra.mxu0 0
  %400 = vmatprep.subr.bf16.mxu0 0
  %401 = vmatpush1.bf16.msra.mxu0 0
  %402 = vmatprep.subr.bf16.mxu0 0
  %403 = vmatpush1.bf16.msra.mxu0 0
  %404 = vmatprep.subr.bf16.mxu0 0
  %405 = vmatpush1.bf16.msra.mxu0 0
  %406 = vmatprep.subr.bf16.mxu0 0
  %407 = vmatpush1.bf16.msra.mxu0 0
  %408 = vmatprep.subr.bf16.mxu0 0
  %409 = vmatpush1.bf16.msra.mxu0 0
  %410 = vmatprep.subr.bf16.mxu0 0
  %411 = vmatpush1.bf16.msra.mxu0 0
  %412 = vmatprep.mubr.bf16.mxu0 0
  %413 = vmatmul.mubr.bf16.gmra.mrb[0].mxu0 %v139
  %v414 = vpop.f32.mrb[0].mxu0
  %v415 = vadd.f32 0.0, %v414
  %v416 = vpop.f32.mrb[0].mxu0
  %v417 = vadd.f32 0.0, %v416
  %v418 = vpop.f32.mrb[0].mxu0
  %v419 = vadd.f32 0.0, %v418
  %v420 = vpop.f32.mrb[0].mxu0
  %v421 = vadd.f32 0.0, %v420
  %422 = vmatprep.mubr.bf16.mxu0 0
  %423 = vmatmul.mubr.bf16.gmra.mrb[0].mxu0 %v140
  %v424 = vpop.f32.mrb[0].mxu0
  %v425 = vadd.f32 0.0, %v424
  %v426 = vpop.f32.mrb[0].mxu0
  %v427 = vadd.f32 0.0, %v426
  %v428 = vpop.f32.mrb[0].mxu0
  %v429 = vadd.f32 0.0, %v428
  %v430 = vpop.f32.mrb[0].mxu0
  %v431 = vadd.f32 0.0, %v430
  %432 = vmatprep.mubr.bf16.mxu0 0
  %433 = vmatmul.mubr.bf16.gmra.mrb[0].mxu0 %v141
  %v434 = vpop.f32.mrb[0].mxu0
  %v435 = vadd.f32 0.0, %v434
  %v436 = vpop.f32.mrb[0].mxu0
  %v437 = vadd.f32 0.0, %v436
  %v438 = vpop.f32.mrb[0].mxu0
  %v439 = vadd.f32 0.0, %v438
  %v440 = vpop.f32.mrb[0].mxu0
  %v441 = vadd.f32 0.0, %v440
  %442 = vmatprep.mubr.bf16.mxu0 0
  %443 = vmatmul.mubr.bf16.gmra.mrb[0].mxu0 %v142
  %v444 = vpop.f32.mrb[0].mxu0
  %v445 = vadd.f32 0.0, %v444
  %v446 = vpop.f32.mrb[0].mxu0
  %v447 = vadd.f32 0.0, %v446
  %v448 = vpop.f32.mrb[0].mxu0
  %v449 = vadd.f32 0.0, %v448
  %v450 = vpop.f32.mrb[0].mxu0
  %v451 = vadd.f32 0.0, %v450
  %452 = vdwg.mxu0
  %v453 = vadd.f32 %v51, %v342
  %v454 = vadd.f32 %v52, %v344
  %v455 = vadd.f32 %v53, %v415
  %v456 = vadd.f32 %v54, %v417
  %v457 = vadd.f32 %v55, %v346
  %v458 = vadd.f32 %v56, %v348
  %v459 = vadd.f32 %v57, %v419
  %v460 = vadd.f32 %v58, %v421
  %v461 = vadd.f32 %v59, %v352
  %v462 = vadd.f32 %v60, %v354
  %v463 = vadd.f32 %v61, %v425
  %v464 = vadd.f32 %v62, %v427
  %v465 = vadd.f32 %v63, %v356
  %v466 = vadd.f32 %v64, %v358
  %v467 = vadd.f32 %v65, %v429
  %v468 = vadd.f32 %v66, %v431
  %v469 = vadd.f32 %v67, %v362
  %v470 = vadd.f32 %v68, %v364
  %v471 = vadd.f32 %v69, %v435
  %v472 = vadd.f32 %v70, %v437
  %v473 = vadd.f32 %v71, %v366
  %v474 = vadd.f32 %v72, %v368
  %v475 = vadd.f32 %v73, %v439
  %v476 = vadd.f32 %v74, %v441
  %v477 = vadd.f32 %v75, %v372
  %v478 = vadd.f32 %v76, %v374
  %v479 = vadd.f32 %v77, %v445
  %v480 = vadd.f32 %v78, %v447
  %v481 = vadd.f32 %v79, %v376
  %v482 = vadd.f32 %v80, %v378
  %v483 = vadd.f32 %v81, %v449
  %v484 = vadd.f32 %v82, %v451
  %485 = vst [vmem:[#allocation2] sm:$0xff] %v453
  %486 = vst [vmem:[#allocation2 + $0x8] sm:$0xff] %v454
  %487 = vst [vmem:[#allocation2 + $0x10] sm:$0xff] %v455
  %488 = vst [vmem:[#allocation2 + $0x18] sm:$0xff] %v456
  %489 = vst [vmem:[#allocation2 + $0x20] sm:$0xff] %v457
  %490 = vst [vmem:[#allocation2 + $0x28] sm:$0xff] %v458
  %491 = vst [vmem:[#allocation2 + $0x30] sm:$0xff] %v459
  %492 = vst [vmem:[#allocation2 + $0x38] sm:$0xff] %v460
  %493 = vst [vmem:[#allocation2 + $0x40] sm:$0xff] %v461
  %494 = vst [vmem:[#allocation2 + $0x48] sm:$0xff] %v462
  %495 = vst [vmem:[#allocation2 + $0x50] sm:$0xff] %v463
  %496 = vst [vmem:[#allocation2 + $0x58] sm:$0xff] %v464
  %497 = vst [vmem:[#allocation2 + $0x60] sm:$0xff] %v465
  %498 = vst [vmem:[#allocation2 + $0x68] sm:$0xff] %v466
  %499 = vst [vmem:[#allocation2 + $0x70] sm:$0xff] %v467
  %500 = vst [vmem:[#allocation2 + $0x78] sm:$0xff] %v468
  %501 = vst [vmem:[#allocation2 + $0x80] sm:$0xff] %v469
  %502 = vst [vmem:[#allocation2 + $0x88] sm:$0xff] %v470
  %503 = vst [vmem:[#allocation2 + $0x90] sm:$0xff] %v471
  %504 = vst [vmem:[#allocation2 + $0x98] sm:$0xff] %v472
  %505 = vst [vmem:[#allocation2 + $0xa0] sm:$0xff] %v473
  %506 = vst [vmem:[#allocation2 + $0xa8] sm:$0xff] %v474
  %507 = vst [vmem:[#allocation2 + $0xb0] sm:$0xff] %v475
  %508 = vst [vmem:[#allocation2 + $0xb8] sm:$0xff] %v476
  %509 = vst [vmem:[#allocation2 + $0xc0] sm:$0xff] %v477
  %510 = vst [vmem:[#allocation2 + $0xc8] sm:$0xff] %v478
  %511 = vst [vmem:[#allocation2 + $0xd0] sm:$0xff] %v479
  %512 = vst [vmem:[#allocation2 + $0xd8] sm:$0xff] %v480
  %513 = vst [vmem:[#allocation2 + $0xe0] sm:$0xff] %v481
  %514 = vst [vmem:[#allocation2 + $0xe8] sm:$0xff] %v482
  %515 = vst [vmem:[#allocation2 + $0xf0] sm:$0xff] %v483
  %516 = vst [vmem:[#allocation2 + $0xf8] sm:$0xff] %v484
  // Predicated region
  $region18: #{lstm_model_forward.5} parent=0 // pred_check
    %p517 = pneg %p15
  $region19: #{lstm_model_forward.5} parent=0 // pred_check_branch
    %519 = sbr.rel (%p517) target = $region21
  $region20: #{lstm_model_forward.5} parent=0 // pred_region
    %v520 = vld [vmem:[#allocation2] sm:$0xff]
    %v521 = vld [vmem:[#allocation2 + $0x8] sm:$0xff]
    %v522 = vld [vmem:[#allocation2 + $0x10] sm:$0xff]
    %v523 = vld [vmem:[#allocation2 + $0x18] sm:$0xff]
    %v524 = vld [vmem:[#allocation2 + $0x20] sm:$0xff]
    %v525 = vld [vmem:[#allocation2 + $0x28] sm:$0xff]
    %v526 = vld [vmem:[#allocation2 + $0x30] sm:$0xff]
    %v527 = vld [vmem:[#allocation2 + $0x38] sm:$0xff]
    %v528 = vld [vmem:[#allocation2 + $0x40] sm:$0xff]
    %v529 = vld [vmem:[#allocation2 + $0x48] sm:$0xff]
    %v530 = vld [vmem:[#allocation2 + $0x50] sm:$0xff]
    %v531 = vld [vmem:[#allocation2 + $0x58] sm:$0xff]
    %v532 = vld [vmem:[#allocation2 + $0x60] sm:$0xff]
    %v533 = vld [vmem:[#allocation2 + $0x68] sm:$0xff]
    %v534 = vld [vmem:[#allocation2 + $0x70] sm:$0xff]
    %v535 = vld [vmem:[#allocation2 + $0x78] sm:$0xff]
    %v536 = vld [vmem:[#allocation2 + $0x80] sm:$0xff]
    %v537 = vld [vmem:[#allocation2 + $0x88] sm:$0xff]
    %v538 = vld [vmem:[#allocation2 + $0x90] sm:$0xff]
    %v539 = vld [vmem:[#allocation2 + $0x98] sm:$0xff]
    %v540 = vld [vmem:[#allocation2 + $0xa0] sm:$0xff]
    %v541 = vld [vmem:[#allocation2 + $0xa8] sm:$0xff]
    %v542 = vld [vmem:[#allocation2 + $0xb0] sm:$0xff]
    %v543 = vld [vmem:[#allocation2 + $0xb8] sm:$0xff]
    %v544 = vld [vmem:[#allocation2 + $0xc0] sm:$0xff]
    %v545 = vld [vmem:[#allocation2 + $0xc8] sm:$0xff]
    %v546 = vld [vmem:[#allocation2 + $0xd0] sm:$0xff]
    %v547 = vld [vmem:[#allocation2 + $0xd8] sm:$0xff]
    %v548 = vld [vmem:[#allocation2 + $0xe0] sm:$0xff]
    %v549 = vld [vmem:[#allocation2 + $0xe8] sm:$0xff]
    %v550 = vld [vmem:[#allocation2 + $0xf0] sm:$0xff]
    %v551 = vld [vmem:[#allocation2 + $0xf8] sm:$0xff]
    %v552 = vld [vmem:[%s2] sm:$0xf]
    %v554 = vlaneseq
    %v555 = vshrl.u32 %v554, 7
    %v556 = vsub.s32 0, %v555
    %v557 = vrot.slane %v552, %v556
    %v558 = vlaneseq
    %v559 = vshrl.u32 %v558, 7
    %v560 = vsub.s32 1, %v559
    %v561 = vrot.slane %v552, %v560
    %v562 = vlaneseq
    %v563 = vshrl.u32 %v562, 7
    %v564 = vsub.s32 2, %v563
    %v565 = vrot.slane %v552, %v564
    %v566 = vlaneseq
    %v567 = vshrl.u32 %v566, 7
    %v568 = vsub.s32 3, %v567
    %v569 = vrot.slane %v552, %v568
    %v574 = vadd.f32 %v520, %v557
    %v575 = vadd.f32 %v521, %v561
    %v576 = vadd.f32 %v522, %v565
    %v577 = vadd.f32 %v523, %v569
    %v578 = vadd.f32 %v524, %v557
    %v579 = vadd.f32 %v525, %v561
    %v580 = vadd.f32 %v526, %v565
    %v581 = vadd.f32 %v527, %v569
    %v582 = vadd.f32 %v528, %v557
    %v583 = vadd.f32 %v529, %v561
    %v584 = vadd.f32 %v530, %v565
    %v585 = vadd.f32 %v531, %v569
    %v586 = vadd.f32 %v532, %v557
    %v587 = vadd.f32 %v533, %v561
    %v588 = vadd.f32 %v534, %v565
    %v589 = vadd.f32 %v535, %v569
    %v590 = vadd.f32 %v536, %v557
    %v591 = vadd.f32 %v537, %v561
    %v592 = vadd.f32 %v538, %v565
    %v593 = vadd.f32 %v539, %v569
    %v594 = vadd.f32 %v540, %v557
    %v595 = vadd.f32 %v541, %v561
    %v596 = vadd.f32 %v542, %v565
    %v597 = vadd.f32 %v543, %v569
    %v598 = vadd.f32 %v544, %v557
    %v599 = vadd.f32 %v545, %v561
    %v600 = vadd.f32 %v546, %v565
    %v601 = vadd.f32 %v547, %v569
    %v602 = vadd.f32 %v548, %v557
    %v603 = vadd.f32 %v549, %v561
    %v604 = vadd.f32 %v550, %v565
    %v605 = vadd.f32 %v551, %v569
    %606 = vst [vmem:[%s3] sm:$0xff] %v574
    %607 = vst [vmem:[%s3 + $0x8] sm:$0xff] %v575
    %608 = vst [vmem:[%s3 + $0x10] sm:$0xff] %v576
    %609 = vst [vmem:[%s3 + $0x18] sm:$0xff] %v577
    %610 = vst [vmem:[%s3 + $0x20] sm:$0xff] %v578
    %611 = vst [vmem:[%s3 + $0x28] sm:$0xff] %v579
    %612 = vst [vmem:[%s3 + $0x30] sm:$0xff] %v580
    %613 = vst [vmem:[%s3 + $0x38] sm:$0xff] %v581
    %614 = vst [vmem:[%s3 + $0x40] sm:$0xff] %v582
    %615 = vst [vmem:[%s3 + $0x48] sm:$0xff] %v583
    %616 = vst [vmem:[%s3 + $0x50] sm:$0xff] %v584
    %617 = vst [vmem:[%s3 + $0x58] sm:$0xff] %v585
    %618 = vst [vmem:[%s3 + $0x60] sm:$0xff] %v586
    %619 = vst [vmem:[%s3 + $0x68] sm:$0xff] %v587
    %620 = vst [vmem:[%s3 + $0x70] sm:$0xff] %v588
    %621 = vst [vmem:[%s3 + $0x78] sm:$0xff] %v589
    %622 = vst [vmem:[%s3 + $0x80] sm:$0xff] %v590
    %623 = vst [vmem:[%s3 + $0x88] sm:$0xff] %v591
    %624 = vst [vmem:[%s3 + $0x90] sm:$0xff] %v592
    %625 = vst [vmem:[%s3 + $0x98] sm:$0xff] %v593
    %626 = vst [vmem:[%s3 + $0xa0] sm:$0xff] %v594
    %627 = vst [vmem:[%s3 + $0xa8] sm:$0xff] %v595
    %628 = vst [vmem:[%s3 + $0xb0] sm:$0xff] %v596
    %629 = vst [vmem:[%s3 + $0xb8] sm:$0xff] %v597
    %630 = vst [vmem:[%s3 + $0xc0] sm:$0xff] %v598
    %631 = vst [vmem:[%s3 + $0xc8] sm:$0xff] %v599
    %632 = vst [vmem:[%s3 + $0xd0] sm:$0xff] %v600
    %633 = vst [vmem:[%s3 + $0xd8] sm:$0xff] %v601
    %634 = vst [vmem:[%s3 + $0xe0] sm:$0xff] %v602
    %635 = vst [vmem:[%s3 + $0xe8] sm:$0xff] %v603
    %636 = vst [vmem:[%s3 + $0xf0] sm:$0xff] %v604
    %637 = vst [vmem:[%s3 + $0xf8] sm:$0xff] %v605
  $region21: #{lstm_model_forward.5} parent=0 // pred_fallthru
    _
  // Predicated region
  $region22: #{lstm_model_forward.5} parent=0 // pred_check
    _
  $region23: #{lstm_model_forward.5} parent=0 // pred_check_branch
    %639 = sbr.rel (0) target = $region25
  $region24: #{lstm_model_forward.5} parent=0 // pred_region
    _
  $region25: #{lstm_model_forward.5} parent=0 // pred_fallthru
    _
  // Predicated region
  $region26: #{lstm_model_forward.5} parent=0 // pred_check
    _
  $region27: #{lstm_model_forward.5} parent=0 // pred_check_branch
    %641 = sbr.rel (0) target = $region29
  $region28: #{lstm_model_forward.5} parent=0 // pred_region
    _
  $region29: #{lstm_model_forward.5} parent=0 // pred_fallthru
    _

// kernel: lstm_model_forward.6
$region0: #{lstm_model_forward.6}
  #allocation0 [shape = 'u32[]', space=smem, size = 0x4, offset = 0x4, fixed_abs, tag = 'smem constant byte address 0x4 - core index']
  #allocation1 [shape = 'u32[144,128]{1,0:T(1,128)}', space=vmem, size = 0x12000, scoped, tag = 'internal scratch']
  #allocation2 [shape = 'f32[8,128]{1,0:T(8,128)}', space=vmem, size = 0x1000, scoped, tag = 'scratch operand']
  #allocation3 [shape = 'f32[8,128]{1,0:T(8,128)}', space=vmem, size = 0x1000, scoped, tag = 'scratch operand']
  %s0 = inlined_call_operand.vmem [shape: f32[8,8,512], index: 0, kind: input, shape index: {}]
  %s1 = inlined_call_operand.vmem [shape: bf16[128,512], index: 1, kind: input, shape index: {}]
  %s2 = inlined_call_operand.vmem [shape: f32[8,8,128], index: 2, kind: output, shape index: {0}]
  %s3 = inlined_call_operand.vmem [shape: f32[8,128], index: 3, kind: output, shape index: {1}]
  %s4 = inlined_call_operand.vmem [shape: f32[8,128], index: 4, kind: output, shape index: {2}]
  %5 = xla_tuple %s2, %s3, %s4
  %s6 = sld [smem:[#allocation0]]
  $region42: #{lstm_model_forward.6} parent=0
    _
  %s8 = ssub.s32 1, %s6
  %s9 = scalar_select 0, %s8, %s6
  // Predicated region
  $region2: #{lstm_model_forward.6} parent=0 // pred_check
    _
  $region3: #{lstm_model_forward.6} parent=0 // pred_check_branch
    %11 = sbr.rel (0) target = $region5
  $region4: #{lstm_model_forward.6} parent=0 // pred_region
    _
  $region5: #{lstm_model_forward.6} parent=0 // pred_fallthru
    _
  // Predicated region
  $region6: #{lstm_model_forward.6} parent=0 // pred_check
    _
  $region7: #{lstm_model_forward.6} parent=0 // pred_check_branch
    %13 = sbr.rel (0) target = $region9
  $region8: #{lstm_model_forward.6} parent=0 // pred_region
    _
  $region9: #{lstm_model_forward.6} parent=0 // pred_fallthru
    _
  %p15 = scmp.eq.s32.totalorder 0, 0
  // Predicated region
  $region10: #{lstm_model_forward.6} parent=0 // pred_check
    %p16 = pneg %p15
  $region11: #{lstm_model_forward.6} parent=0 // pred_check_branch
    %18 = sbr.rel (%p16) target = $region13
  $region12: #{lstm_model_forward.6} parent=0 // pred_region
    %19 = vst [vmem:[#allocation2] sm:$0xff] 0.0
    %20 = vst [vmem:[#allocation3] sm:$0xff] 0.0
  $region13: #{lstm_model_forward.6} parent=0 // pred_fallthru
    _
  %v21 = vld [vmem:[%s1] sm:$0xff]
  %v22 = vld [vmem:[%s1 + $0x8] sm:$0xff]
  %v23 = vld [vmem:[%s1 + $0x10] sm:$0xff]
  %v24 = vld [vmem:[%s1 + $0x18] sm:$0xff]
  %v25 = vld [vmem:[%s1 + $0x20] sm:$0xff]
  %v26 = vld [vmem:[%s1 + $0x28] sm:$0xff]
  %v27 = vld [vmem:[%s1 + $0x30] sm:$0xff]
  %v28 = vld [vmem:[%s1 + $0x38] sm:$0xff]
  %v29 = vld [vmem:[%s1 + $0x40] sm:$0xff]
  %v30 = vld [vmem:[%s1 + $0x48] sm:$0xff]
  %v31 = vld [vmem:[%s1 + $0x50] sm:$0xff]
  %v32 = vld [vmem:[%s1 + $0x58] sm:$0xff]
  %v33 = vld [vmem:[%s1 + $0x60] sm:$0xff]
  %v34 = vld [vmem:[%s1 + $0x68] sm:$0xff]
  %v35 = vld [vmem:[%s1 + $0x70] sm:$0xff]
  %v36 = vld [vmem:[%s1 + $0x78] sm:$0xff]
  %v37 = vld [vmem:[%s1 + $0x80] sm:$0xff]
  %v38 = vld [vmem:[%s1 + $0x88] sm:$0xff]
  %v39 = vld [vmem:[%s1 + $0x90] sm:$0xff]
  %v40 = vld [vmem:[%s1 + $0x98] sm:$0xff]
  %v41 = vld [vmem:[%s1 + $0xa0] sm:$0xff]
  %v42 = vld [vmem:[%s1 + $0xa8] sm:$0xff]
  %v43 = vld [vmem:[%s1 + $0xb0] sm:$0xff]
  %v44 = vld [vmem:[%s1 + $0xb8] sm:$0xff]
  %v45 = vld [vmem:[%s1 + $0xc0] sm:$0xff]
  %v46 = vld [vmem:[%s1 + $0xc8] sm:$0xff]
  %v47 = vld [vmem:[%s1 + $0xd0] sm:$0xff]
  %v48 = vld [vmem:[%s1 + $0xd8] sm:$0xff]
  %v49 = vld [vmem:[%s1 + $0xe0] sm:$0xff]
  %v50 = vld [vmem:[%s1 + $0xe8] sm:$0xff]
  %v51 = vld [vmem:[%s1 + $0xf0] sm:$0xff]
  %v52 = vld [vmem:[%s1 + $0xf8] sm:$0xff]
  %v53 = vld [vmem:[#allocation2] sm:$0xff]
  %v54 = vld [vmem:[#allocation3] sm:$0xff]
  %v55 = vld [vmem:[%s0] sm:$0xff]
  %v56 = vld [vmem:[%s0 + $0x8] sm:$0xff]
  %v57 = vld [vmem:[%s0 + $0x10] sm:$0xff]
  %v58 = vld [vmem:[%s0 + $0x18] sm:$0xff]
  %v59 = vpack.c.bf16 %v53, %v53
  %v92 = vunpack.c.l.b16 %v21
  %v93 = vunpack.c.h.b16 %v21
  %v94 = vunpack.c.l.b16 %v22
  %v95 = vunpack.c.h.b16 %v22
  %v96 = vunpack.c.l.b16 %v23
  %v97 = vunpack.c.h.b16 %v23
  %v98 = vunpack.c.l.b16 %v24
  %v99 = vunpack.c.h.b16 %v24
  %v100 = vunpack.c.l.b16 %v25
  %v101 = vunpack.c.h.b16 %v25
  %v102 = vunpack.c.l.b16 %v26
  %v103 = vunpack.c.h.b16 %v26
  %v104 = vunpack.c.l.b16 %v27
  %v105 = vunpack.c.h.b16 %v27
  %v106 = vunpack.c.l.b16 %v28
  %v107 = vunpack.c.h.b16 %v28
  %v108 = vunpack.c.l.b16 %v29
  %v109 = vunpack.c.h.b16 %v29
  %v110 = vunpack.c.l.b16 %v30
  %v111 = vunpack.c.h.b16 %v30
  %v112 = vunpack.c.l.b16 %v31
  %v113 = vunpack.c.h.b16 %v31
  %v114 = vunpack.c.l.b16 %v32
  %v115 = vunpack.c.h.b16 %v32
  %v116 = vunpack.c.l.b16 %v33
  %v117 = vunpack.c.h.b16 %v33
  %v118 = vunpack.c.l.b16 %v34
  %v119 = vunpack.c.h.b16 %v34
  %v120 = vunpack.c.l.b16 %v35
  %v121 = vunpack.c.h.b16 %v35
  %v122 = vunpack.c.l.b16 %v36
  %v123 = vunpack.c.h.b16 %v36
  %v124 = vunpack.c.l.b16 %v37
  %v125 = vunpack.c.h.b16 %v37
  %v126 = vunpack.c.l.b16 %v38
  %v127 = vunpack.c.h.b16 %v38
  %v128 = vunpack.c.l.b16 %v39
  %v129 = vunpack.c.h.b16 %v39
  %v130 = vunpack.c.l.b16 %v40
  %v131 = vunpack.c.h.b16 %v40
  %v132 = vunpack.c.l.b16 %v41
  %v133 = vunpack.c.h.b16 %v41
  %v134 = vunpack.c.l.b16 %v42
  %v135 = vunpack.c.h.b16 %v42
  %v136 = vunpack.c.l.b16 %v43
  %v137 = vunpack.c.h.b16 %v43
  %v138 = vunpack.c.l.b16 %v44
  %v139 = vunpack.c.h.b16 %v44
  %v140 = vunpack.c.l.b16 %v45
  %v141 = vunpack.c.h.b16 %v45
  %v142 = vunpack.c.l.b16 %v46
  %v143 = vunpack.c.h.b16 %v46
  %v144 = vunpack.c.l.b16 %v47
  %v145 = vunpack.c.h.b16 %v47
  %v146 = vunpack.c.l.b16 %v48
  %v147 = vunpack.c.h.b16 %v48
  %v148 = vunpack.c.l.b16 %v49
  %v149 = vunpack.c.h.b16 %v49
  %v150 = vunpack.c.l.b16 %v50
  %v151 = vunpack.c.h.b16 %v50
  %v152 = vunpack.c.l.b16 %v51
  %v153 = vunpack.c.h.b16 %v51
  %v154 = vunpack.c.l.b16 %v52
  %v155 = vunpack.c.h.b16 %v52
  %v156 = vpack.c.b16 %v96, %v92
  %v157 = vpack.c.b16 %v97, %v93
  %v158 = vpack.c.b16 %v98, %v94
  %v159 = vpack.c.b16 %v99, %v95
  %v160 = vpack.c.b16 %v104, %v100
  %v161 = vpack.c.b16 %v105, %v101
  %v162 = vpack.c.b16 %v106, %v102
  %v163 = vpack.c.b16 %v107, %v103
  %v164 = vpack.c.b16 %v112, %v108
  %v165 = vpack.c.b16 %v113, %v109
  %v166 = vpack.c.b16 %v114, %v110
  %v167 = vpack.c.b16 %v115, %v111
  %v168 = vpack.c.b16 %v120, %v116
  %v169 = vpack.c.b16 %v121, %v117
  %v170 = vpack.c.b16 %v122, %v118
  %v171 = vpack.c.b16 %v123, %v119
  %v172 = vpack.c.b16 %v128, %v124
  %v173 = vpack.c.b16 %v129, %v125
  %v174 = vpack.c.b16 %v130, %v126
  %v175 = vpack.c.b16 %v131, %v127
  %v176 = vpack.c.b16 %v136, %v132
  %v177 = vpack.c.b16 %v137, %v133
  %v178 = vpack.c.b16 %v138, %v134
  %v179 = vpack.c.b16 %v139, %v135
  %v180 = vpack.c.b16 %v144, %v140
  %v181 = vpack.c.b16 %v145, %v141
  %v182 = vpack.c.b16 %v146, %v142
  %v183 = vpack.c.b16 %v147, %v143
  %v184 = vpack.c.b16 %v152, %v148
  %v185 = vpack.c.b16 %v153, %v149
  %v186 = vpack.c.b16 %v154, %v150
  %v187 = vpack.c.b16 %v155, %v151
  %220 = vmatprep.subr.bf16.mxu0 %v157
  %221 = vmatpush1.bf16.msra.mxu0 %v156
  %222 = vmatprep.subr.bf16.mxu0 %v161
  %223 = vmatpush1.bf16.msra.mxu0 %v160
  %224 = vmatprep.subr.bf16.mxu0 %v165
  %225 = vmatpush1.bf16.msra.mxu0 %v164
  %226 = vmatprep.subr.bf16.mxu0 %v169
  %227 = vmatpush1.bf16.msra.mxu0 %v168
  %228 = vmatprep.subr.bf16.mxu0 %v173
  %229 = vmatpush1.bf16.msra.mxu0 %v172
  %230 = vmatprep.subr.bf16.mxu0 %v177
  %231 = vmatpush1.bf16.msra.mxu0 %v176
  %232 = vmatprep.subr.bf16.mxu0 %v181
  %233 = vmatpush1.bf16.msra.mxu0 %v180
  %234 = vmatprep.subr.bf16.mxu0 %v185
  %235 = vmatpush1.bf16.msra.mxu0 %v184
  %236 = vmatprep.subr.bf16.mxu0 0
  %237 = vmatpush1.bf16.msra.mxu0 0
  %238 = vmatprep.subr.bf16.mxu0 0
  %239 = vmatpush1.bf16.msra.mxu0 0
  %240 = vmatprep.subr.bf16.mxu0 0
  %241 = vmatpush1.bf16.msra.mxu0 0
  %242 = vmatprep.subr.bf16.mxu0 0
  %243 = vmatpush1.bf16.msra.mxu0 0
  %244 = vmatprep.subr.bf16.mxu0 0
  %245 = vmatpush1.bf16.msra.mxu0 0
  %246 = vmatprep.subr.bf16.mxu0 0
  %247 = vmatpush1.bf16.msra.mxu0 0
  %248 = vmatprep.subr.bf16.mxu0 0
  %249 = vmatpush1.bf16.msra.mxu0 0
  %250 = vmatprep.subr.bf16.mxu0 0
  %251 = vmatpush1.bf16.msra.mxu0 0
  %252 = vmatprep.mubr.bf16.mxu0 0
  %253 = vmatmul.mubr.bf16.gmra.mrb[0].mxu0 %v59
  %v254 = vpop.f32.mrb[0].mxu0
  %v255 = vadd.f32 0.0, %v254
  %v256 = vpop.f32.mrb[0].mxu0
  %v257 = vadd.f32 0.0, %v256
  %v258 = vpop.f32.mrb[0].mxu0
  %v259 = vpop.f32.mrb[0].mxu0
  %260 = vdwg.mxu0
  %261 = vmatprep.subr.bf16.mxu0 %v159
  %262 = vmatpush1.bf16.msra.mxu0 %v158
  %263 = vmatprep.subr.bf16.mxu0 %v163
  %264 = vmatpush1.bf16.msra.mxu0 %v162
  %265 = vmatprep.subr.bf16.mxu0 %v167
  %266 = vmatpush1.bf16.msra.mxu0 %v166
  %267 = vmatprep.subr.bf16.mxu0 %v171
  %268 = vmatpush1.bf16.msra.mxu0 %v170
  %269 = vmatprep.subr.bf16.mxu0 %v175
  %270 = vmatpush1.bf16.msra.mxu0 %v174
  %271 = vmatprep.subr.bf16.mxu0 %v179
  %272 = vmatpush1.bf16.msra.mxu0 %v178
  %273 = vmatprep.subr.bf16.mxu0 %v183
  %274 = vmatpush1.bf16.msra.mxu0 %v182
  %275 = vmatprep.subr.bf16.mxu0 %v187
  %276 = vmatpush1.bf16.msra.mxu0 %v186
  %277 = vmatprep.subr.bf16.mxu0 0
  %278 = vmatpush1.bf16.msra.mxu0 0
  %279 = vmatprep.subr.bf16.mxu0 0
  %280 = vmatpush1.bf16.msra.mxu0 0
  %281 = vmatprep.subr.bf16.mxu0 0
  %282 = vmatpush1.bf16.msra.mxu0 0
  %283 = vmatprep.subr.bf16.mxu0 0
  %284 = vmatpush1.bf16.msra.mxu0 0
  %285 = vmatprep.subr.bf16.mxu0 0
  %286 = vmatpush1.bf16.msra.mxu0 0
  %287 = vmatprep.subr.bf16.mxu0 0
  %288 = vmatpush1.bf16.msra.mxu0 0
  %289 = vmatprep.subr.bf16.mxu0 0
  %290 = vmatpush1.bf16.msra.mxu0 0
  %291 = vmatprep.subr.bf16.mxu0 0
  %292 = vmatpush1.bf16.msra.mxu0 0
  %293 = vmatprep.mubr.bf16.mxu0 0
  %294 = vmatmul.mubr.bf16.gmra.mrb[0].mxu0 %v59
  %v295 = vpop.f32.mrb[0].mxu0
  %v296 = vadd.f32 0.0, %v295
  %v297 = vpop.f32.mrb[0].mxu0
  %v298 = vadd.f32 0.0, %v297
  %v299 = vpop.f32.mrb[0].mxu0
  %v300 = vpop.f32.mrb[0].mxu0
  %301 = vdwg.mxu0
  %v302 = vadd.f32 %v55, %v255
  %v303 = vadd.f32 %v56, %v257
  %v304 = vadd.f32 %v57, %v296
  %v305 = vadd.f32 %v58, %v298
  %v306 = vxor.u32 %v302, 2147483648
  %v307 = vmul.f32 %v306, 1.442695
  %v308 = vpow.pop %v307
  %v309 = vadd.f32 %v308, 1.0
  %v310 = vrcp.pop %v309
  %v311 = vmul.f32 1.0, %v310
  %v312 = vxor.u32 %v303, 2147483648
  %v313 = vmul.f32 %v312, 1.442695
  %v314 = vpow.pop %v313
  %v315 = vadd.f32 %v314, 1.0
  %v316 = vrcp.pop %v315
  %v317 = vmul.f32 1.0, %v316
  %v318 = vtanh.pop %v304
  %v319 = vxor.u32 %v305, 2147483648
  %v320 = vmul.f32 %v319, 1.442695
  %v321 = vpow.pop %v320
  %v322 = vadd.f32 %v321, 1.0
  %v323 = vrcp.pop %v322
  %v324 = vmul.f32 1.0, %v323
  %v325 = vmul.f32 %v317, %v54
  %v326 = vmul.f32 %v311, %v318
  %v327 = vadd.f32 %v325, %v326
  %v328 = vtanh.pop %v327
  %v329 = vmul.f32 %v324, %v328
  %330 = vst [vmem:[%s2] sm:$0xff] %v329
  %s331 = scalar_lea.vmem %s0, 32
  %v332 = vld [vmem:[%s331] sm:$0xff]
  %v333 = vld [vmem:[%s331 + $0x8] sm:$0xff]
  %v334 = vld [vmem:[%s331 + $0x10] sm:$0xff]
  %v335 = vld [vmem:[%s331 + $0x18] sm:$0xff]
  %v336 = vpack.c.bf16 %v329, %v329
  %337 = vmatprep.subr.bf16.mxu0 %v157
  %338 = vmatpush1.bf16.msra.mxu0 %v156
  %339 = vmatprep.subr.bf16.mxu0 %v161
  %340 = vmatpush1.bf16.msra.mxu0 %v160
  %341 = vmatprep.subr.bf16.mxu0 %v165
  %342 = vmatpush1.bf16.msra.mxu0 %v164
  %343 = vmatprep.subr.bf16.mxu0 %v169
  %344 = vmatpush1.bf16.msra.mxu0 %v168
  %345 = vmatprep.subr.bf16.mxu0 %v173
  %346 = vmatpush1.bf16.msra.mxu0 %v172
  %347 = vmatprep.subr.bf16.mxu0 %v177
  %348 = vmatpush1.bf16.msra.mxu0 %v176
  %349 = vmatprep.subr.bf16.mxu0 %v181
  %350 = vmatpush1.bf16.msra.mxu0 %v180
  %351 = vmatprep.subr.bf16.mxu0 %v185
  %352 = vmatpush1.bf16.msra.mxu0 %v184
  %353 = vmatprep.subr.bf16.mxu0 0
  %354 = vmatpush1.bf16.msra.mxu0 0
  %355 = vmatprep.subr.bf16.mxu0 0
  %356 = vmatpush1.bf16.msra.mxu0 0
  %357 = vmatprep.subr.bf16.mxu0 0
  %358 = vmatpush1.bf16.msra.mxu0 0
  %359 = vmatprep.subr.bf16.mxu0 0
  %360 = vmatpush1.bf16.msra.mxu0 0
  %361 = vmatprep.subr.bf16.mxu0 0
  %362 = vmatpush1.bf16.msra.mxu0 0
  %363 = vmatprep.subr.bf16.mxu0 0
  %364 = vmatpush1.bf16.msra.mxu0 0
  %365 = vmatprep.subr.bf16.mxu0 0
  %366 = vmatpush1.bf16.msra.mxu0 0
  %367 = vmatprep.subr.bf16.mxu0 0
  %368 = vmatpush1.bf16.msra.mxu0 0
  %369 = vmatprep.mubr.bf16.mxu0 0
  %370 = vmatmul.mubr.bf16.gmra.mrb[0].mxu0 %v336
  %v371 = vpop.f32.mrb[0].mxu0
  %v372 = vadd.f32 0.0, %v371
  %v373 = vpop.f32.mrb[0].mxu0
  %v374 = vadd.f32 0.0, %v373
  %v375 = vpop.f32.mrb[0].mxu0
  %v376 = vpop.f32.mrb[0].mxu0
  %377 = vdwg.mxu0
  %378 = vmatprep.subr.bf16.mxu0 %v159
  %379 = vmatpush1.bf16.msra.mxu0 %v158
  %380 = vmatprep.subr.bf16.mxu0 %v163
  %381 = vmatpush1.bf16.msra.mxu0 %v162
  %382 = vmatprep.subr.bf16.mxu0 %v167
  %383 = vmatpush1.bf16.msra.mxu0 %v166
  %384 = vmatprep.subr.bf16.mxu0 %v171
  %385 = vmatpush1.bf16.msra.mxu0 %v170
  %386 = vmatprep.subr.bf16.mxu0 %v175
  %387 = vmatpush1.bf16.msra.mxu0 %v174
  %388 = vmatprep.subr.bf16.mxu0 %v179
  %389 = vmatpush1.bf16.msra.mxu0 %v178
  %390 = vmatprep.subr.bf16.mxu0 %v183
  %391 = vmatpush1.bf16.msra.mxu0 %v182
  %392 = vmatprep.subr.bf16.mxu0 %v187
  %393 = vmatpush1.bf16.msra.mxu0 %v186
  %394 = vmatprep.subr.bf16.mxu0 0
  %395 = vmatpush1.bf16.msra.mxu0 0
  %396 = vmatprep.subr.bf16.mxu0 0
  %397 = vmatpush1.bf16.msra.mxu0 0
  %398 = vmatprep.subr.bf16.mxu0 0
  %399 = vmatpush1.bf16.msra.mxu0 0
  %400 = vmatprep.subr.bf16.mxu0 0
  %401 = vmatpush1.bf16.msra.mxu0 0
  %402 = vmatprep.subr.bf16.mxu0 0
  %403 = vmatpush1.bf16.msra.mxu0 0
  %404 = vmatprep.subr.bf16.mxu0 0
  %405 = vmatpush1.bf16.msra.mxu0 0
  %406 = vmatprep.subr.bf16.mxu0 0
  %407 = vmatpush1.bf16.msra.mxu0 0
  %408 = vmatprep.subr.bf16.mxu0 0
  %409 = vmatpush1.bf16.msra.mxu0 0
  %410 = vmatprep.mubr.bf16.mxu0 0
  %411 = vmatmul.mubr.bf16.gmra.mrb[0].mxu0 %v336
  %v412 = vpop.f32.mrb[0].mxu0
  %v413 = vadd.f32 0.0, %v412
  %v414 = vpop.f32.mrb[0].mxu0
  %v415 = vadd.f32 0.0, %v414
  %v416 = vpop.f32.mrb[0].mxu0
  %v417 = vpop.f32.mrb[0].mxu0
  %418 = vdwg.mxu0
  %v419 = vadd.f32 %v332, %v372
  %v420 = vadd.f32 %v333, %v374
  %v421 = vadd.f32 %v334, %v413
  %v422 = vadd.f32 %v335, %v415
  %v423 = vxor.u32 %v419, 2147483648
  %v424 = vmul.f32 %v423, 1.442695
  %v425 = vpow.pop %v424
  %v426 = vadd.f32 %v425, 1.0
  %v427 = vrcp.pop %v426
  %v428 = vmul.f32 1.0, %v427
  %v429 = vxor.u32 %v420, 2147483648
  %v430 = vmul.f32 %v429, 1.442695
  %v431 = vpow.pop %v430
  %v432 = vadd.f32 %v431, 1.0
  %v433 = vrcp.pop %v432
  %v434 = vmul.f32 1.0, %v433
  %v435 = vtanh.pop %v421
  %v436 = vxor.u32 %v422, 2147483648
  %v437 = vmul.f32 %v436, 1.442695
  %v438 = vpow.pop %v437
  %v439 = vadd.f32 %v438, 1.0
  %v440 = vrcp.pop %v439
  %v441 = vmul.f32 1.0, %v440
  %v442 = vmul.f32 %v434, %v327
  %v443 = vmul.f32 %v428, %v435
  %v444 = vadd.f32 %v442, %v443
  %v445 = vtanh.pop %v444
  %v446 = vmul.f32 %v441, %v445
  %s447 = scalar_lea.vmem %s2, 8
  %448 = vst [vmem:[%s447] sm:$0xff] %v446
  %s449 = scalar_lea.vmem %s0, 64
  %v450 = vld [vmem:[%s449] sm:$0xff]
  %v451 = vld [vmem:[%s449 + $0x8] sm:$0xff]
  %v452 = vld [vmem:[%s449 + $0x10] sm:$0xff]
  %v453 = vld [vmem:[%s449 + $0x18] sm:$0xff]
  %v454 = vpack.c.bf16 %v446, %v446
  %455 = vmatprep.subr.bf16.mxu0 %v157
  %456 = vmatpush1.bf16.msra.mxu0 %v156
  %457 = vmatprep.subr.bf16.mxu0 %v161
  %458 = vmatpush1.bf16.msra.mxu0 %v160
  %459 = vmatprep.subr.bf16.mxu0 %v165
  %460 = vmatpush1.bf16.msra.mxu0 %v164
  %461 = vmatprep.subr.bf16.mxu0 %v169
  %462 = vmatpush1.bf16.msra.mxu0 %v168
  %463 = vmatprep.subr.bf16.mxu0 %v173
  %464 = vmatpush1.bf16.msra.mxu0 %v172
  %465 = vmatprep.subr.bf16.mxu0 %v177
  %466 = vmatpush1.bf16.msra.mxu0 %v176
  %467 = vmatprep.subr.bf16.mxu0 %v181
  %468 = vmatpush1.bf16.msra.mxu0 %v180
  %469 = vmatprep.subr.bf16.mxu0 %v185
  %470 = vmatpush1.bf16.msra.mxu0 %v184
  %471 = vmatprep.subr.bf16.mxu0 0
  %472 = vmatpush1.bf16.msra.mxu0 0
  %473 = vmatprep.subr.bf16.mxu0 0
  %474 = vmatpush1.bf16.msra.mxu0 0
  %475 = vmatprep.subr.bf16.mxu0 0
  %476 = vmatpush1.bf16.msra.mxu0 0
  %477 = vmatprep.subr.bf16.mxu0 0
  %478 = vmatpush1.bf16.msra.mxu0 0
  %479 = vmatprep.subr.bf16.mxu0 0
  %480 = vmatpush1.bf16.msra.mxu0 0
  %481 = vmatprep.subr.bf16.mxu0 0
  %482 = vmatpush1.bf16.msra.mxu0 0
  %483 = vmatprep.subr.bf16.mxu0 0
  %484 = vmatpush1.bf16.msra.mxu0 0
  %485 = vmatprep.subr.bf16.mxu0 0
  %486 = vmatpush1.bf16.msra.mxu0 0
  %487 = vmatprep.mubr.bf16.mxu0 0
  %488 = vmatmul.mubr.bf16.gmra.mrb[0].mxu0 %v454
  %v489 = vpop.f32.mrb[0].mxu0
  %v490 = vadd.f32 0.0, %v489
  %v491 = vpop.f32.mrb[0].mxu0
  %v492 = vadd.f32 0.0, %v491
  %v493 = vpop.f32.mrb[0].mxu0
  %v494 = vpop.f32.mrb[0].mxu0
  %495 = vdwg.mxu0
  %496 = vmatprep.subr.bf16.mxu0 %v159
  %497 = vmatpush1.bf16.msra.mxu0 %v158
  %498 = vmatprep.subr.bf16.mxu0 %v163
  %499 = vmatpush1.bf16.msra.mxu0 %v162
  %500 = vmatprep.subr.bf16.mxu0 %v167
  %501 = vmatpush1.bf16.msra.mxu0 %v166
  %502 = vmatprep.subr.bf16.mxu0 %v171
  %503 = vmatpush1.bf16.msra.mxu0 %v170
  %504 = vmatprep.subr.bf16.mxu0 %v175
  %505 = vmatpush1.bf16.msra.mxu0 %v174
  %506 = vmatprep.subr.bf16.mxu0 %v179
  %507 = vmatpush1.bf16.msra.mxu0 %v178
  %508 = vmatprep.subr.bf16.mxu0 %v183
  %509 = vmatpush1.bf16.msra.mxu0 %v182
  %510 = vmatprep.subr.bf16.mxu0 %v187
  %511 = vmatpush1.bf16.msra.mxu0 %v186
  %512 = vmatprep.subr.bf16.mxu0 0
  %513 = vmatpush1.bf16.msra.mxu0 0
  %514 = vmatprep.subr.bf16.mxu0 0
  %515 = vmatpush1.bf16.msra.mxu0 0
  %516 = vmatprep.subr.bf16.mxu0 0
  %517 = vmatpush1.bf16.msra.mxu0 0
  %518 = vmatprep.subr.bf16.mxu0 0
  %519 = vmatpush1.bf16.msra.mxu0 0
  %520 = vmatprep.subr.bf16.mxu0 0
  %521 = vmatpush1.bf16.msra.mxu0 0
  %522 = vmatprep.subr.bf16.mxu0 0
  %523 = vmatpush1.bf16.msra.mxu0 0
  %524 = vmatprep.subr.bf16.mxu0 0
  %525 = vmatpush1.bf16.msra.mxu0 0
  %526 = vmatprep.subr.bf16.mxu0 0
  %527 = vmatpush1.bf16.msra.mxu0 0
  %528 = vmatprep.mubr.bf16.mxu0 0
  %529 = vmatmul.mubr.bf16.gmra.mrb[0].mxu0 %v454
  %v530 = vpop.f32.mrb[0].mxu0
  %v531 = vadd.f32 0.0, %v530
  %v532 = vpop.f32.mrb[0].mxu0
  %v533 = vadd.f32 0.0, %v532
  %v534 = vpop.f32.mrb[0].mxu0
  %v535 = vpop.f32.mrb[0].mxu0
  %536 = vdwg.mxu0
  %v537 = vadd.f32 %v450, %v490
  %v538 = vadd.f32 %v451, %v492
  %v539 = vadd.f32 %v452, %v531
  %v540 = vadd.f32 %v453, %v533
  %v541 = vxor.u32 %v537, 2147483648
  %v542 = vmul.f32 %v541, 1.442695
  %v543 = vpow.pop %v542
  %v544 = vadd.f32 %v543, 1.0
  %v545 = vrcp.pop %v544
  %v546 = vmul.f32 1.0, %v545
  %v547 = vxor.u32 %v538, 2147483648
  %v548 = vmul.f32 %v547, 1.442695
  %v549 = vpow.pop %v548
  %v550 = vadd.f32 %v549, 1.0
  %v551 = vrcp.pop %v550
  %v552 = vmul.f32 1.0, %v551
  %v553 = vtanh.pop %v539
  %v554 = vxor.u32 %v540, 2147483648
  %v555 = vmul.f32 %v554, 1.442695
  %v556 = vpow.pop %v555
  %v557 = vadd.f32 %v556, 1.0
  %v558 = vrcp.pop %v557
  %v559 = vmul.f32 1.0, %v558
  %v560 = vmul.f32 %v552, %v444
  %v561 = vmul.f32 %v546, %v553
  %v562 = vadd.f32 %v560, %v561
  %v563 = vtanh.pop %v562
  %v564 = vmul.f32 %v559, %v563
  %s565 = scalar_lea.vmem %s2, 16
  %566 = vst [vmem:[%s565] sm:$0xff] %v564
  %s567 = scalar_lea.vmem %s0, 96
  %v568 = vld [vmem:[%s567] sm:$0xff]
  %v569 = vld [vmem:[%s567 + $0x8] sm:$0xff]
  %v570 = vld [vmem:[%s567 + $0x10] sm:$0xff]
  %v571 = vld [vmem:[%s567 + $0x18] sm:$0xff]
  %v572 = vpack.c.bf16 %v564, %v564
  %573 = vmatprep.subr.bf16.mxu0 %v157
  %574 = vmatpush1.bf16.msra.mxu0 %v156
  %575 = vmatprep.subr.bf16.mxu0 %v161
  %576 = vmatpush1.bf16.msra.mxu0 %v160
  %577 = vmatprep.subr.bf16.mxu0 %v165
  %578 = vmatpush1.bf16.msra.mxu0 %v164
  %579 = vmatprep.subr.bf16.mxu0 %v169
  %580 = vmatpush1.bf16.msra.mxu0 %v168
  %581 = vmatprep.subr.bf16.mxu0 %v173
  %582 = vmatpush1.bf16.msra.mxu0 %v172
  %583 = vmatprep.subr.bf16.mxu0 %v177
  %584 = vmatpush1.bf16.msra.mxu0 %v176
  %585 = vmatprep.subr.bf16.mxu0 %v181
  %586 = vmatpush1.bf16.msra.mxu0 %v180
  %587 = vmatprep.subr.bf16.mxu0 %v185
  %588 = vmatpush1.bf16.msra.mxu0 %v184
  %589 = vmatprep.subr.bf16.mxu0 0
  %590 = vmatpush1.bf16.msra.mxu0 0
  %591 = vmatprep.subr.bf16.mxu0 0
  %592 = vmatpush1.bf16.msra.mxu0 0
  %593 = vmatprep.subr.bf16.mxu0 0
  %594 = vmatpush1.bf16.msra.mxu0 0
  %595 = vmatprep.subr.bf16.mxu0 0
  %596 = vmatpush1.bf16.msra.mxu0 0
  %597 = vmatprep.subr.bf16.mxu0 0
  %598 = vmatpush1.bf16.msra.mxu0 0
  %599 = vmatprep.subr.bf16.mxu0 0
  %600 = vmatpush1.bf16.msra.mxu0 0
  %601 = vmatprep.subr.bf16.mxu0 0
  %602 = vmatpush1.bf16.msra.mxu0 0
  %603 = vmatprep.subr.bf16.mxu0 0
  %604 = vmatpush1.bf16.msra.mxu0 0
  %605 = vmatprep.mubr.bf16.mxu0 0
  %606 = vmatmul.mubr.bf16.gmra.mrb[0].mxu0 %v572
  %v607 = vpop.f32.mrb[0].mxu0
  %v608 = vadd.f32 0.0, %v607
  %v609 = vpop.f32.mrb[0].mxu0
  %v610 = vadd.f32 0.0, %v609
  %v611 = vpop.f32.mrb[0].mxu0
  %v612 = vpop.f32.mrb[0].mxu0
  %613 = vdwg.mxu0
  %614 = vmatprep.subr.bf16.mxu0 %v159
  %615 = vmatpush1.bf16.msra.mxu0 %v158
  %616 = vmatprep.subr.bf16.mxu0 %v163
  %617 = vmatpush1.bf16.msra.mxu0 %v162
  %618 = vmatprep.subr.bf16.mxu0 %v167
  %619 = vmatpush1.bf16.msra.mxu0 %v166
  %620 = vmatprep.subr.bf16.mxu0 %v171
  %621 = vmatpush1.bf16.msra.mxu0 %v170
  %622 = vmatprep.subr.bf16.mxu0 %v175
  %623 = vmatpush1.bf16.msra.mxu0 %v174
  %624 = vmatprep.subr.bf16.mxu0 %v179
  %625 = vmatpush1.bf16.msra.mxu0 %v178
  %626 = vmatprep.subr.bf16.mxu0 %v183
  %627 = vmatpush1.bf16.msra.mxu0 %v182
  %628 = vmatprep.subr.bf16.mxu0 %v187
  %629 = vmatpush1.bf16.msra.mxu0 %v186
  %630 = vmatprep.subr.bf16.mxu0 0
  %631 = vmatpush1.bf16.msra.mxu0 0
  %632 = vmatprep.subr.bf16.mxu0 0
  %633 = vmatpush1.bf16.msra.mxu0 0
  %634 = vmatprep.subr.bf16.mxu0 0
  %635 = vmatpush1.bf16.msra.mxu0 0
  %636 = vmatprep.subr.bf16.mxu0 0
  %637 = vmatpush1.bf16.msra.mxu0 0
  %638 = vmatprep.subr.bf16.mxu0 0
  %639 = vmatpush1.bf16.msra.mxu0 0
  %640 = vmatprep.subr.bf16.mxu0 0
  %641 = vmatpush1.bf16.msra.mxu0 0
  %642 = vmatprep.subr.bf16.mxu0 0
  %643 = vmatpush1.bf16.msra.mxu0 0
  %644 = vmatprep.subr.bf16.mxu0 0
  %645 = vmatpush1.bf16.msra.mxu0 0
  %646 = vmatprep.mubr.bf16.mxu0 0
  %647 = vmatmul.mubr.bf16.gmra.mrb[0].mxu0 %v572
  %v648 = vpop.f32.mrb[0].mxu0
  %v649 = vadd.f32 0.0, %v648
  %v650 = vpop.f32.mrb[0].mxu0
  %v651 = vadd.f32 0.0, %v650
  %v652 = vpop.f32.mrb[0].mxu0
  %v653 = vpop.f32.mrb[0].mxu0
  %654 = vdwg.mxu0
  %v655 = vadd.f32 %v568, %v608
  %v656 = vadd.f32 %v569, %v610
  %v657 = vadd.f32 %v570, %v649
  %v658 = vadd.f32 %v571, %v651
  %v659 = vxor.u32 %v655, 2147483648
  %v660 = vmul.f32 %v659, 1.442695
  %v661 = vpow.pop %v660
  %v662 = vadd.f32 %v661, 1.0
  %v663 = vrcp.pop %v662
  %v664 = vmul.f32 1.0, %v663
  %v665 = vxor.u32 %v656, 2147483648
  %v666 = vmul.f32 %v665, 1.442695
  %v667 = vpow.pop %v666
  %v668 = vadd.f32 %v667, 1.0
  %v669 = vrcp.pop %v668
  %v670 = vmul.f32 1.0, %v669
  %v671 = vtanh.pop %v657
  %v672 = vxor.u32 %v658, 2147483648
  %v673 = vmul.f32 %v672, 1.442695
  %v674 = vpow.pop %v673
  %v675 = vadd.f32 %v674, 1.0
  %v676 = vrcp.pop %v675
  %v677 = vmul.f32 1.0, %v676
  %v678 = vmul.f32 %v670, %v562
  %v679 = vmul.f32 %v664, %v671
  %v680 = vadd.f32 %v678, %v679
  %v681 = vtanh.pop %v680
  %v682 = vmul.f32 %v677, %v681
  %s683 = scalar_lea.vmem %s2, 24
  %684 = vst [vmem:[%s683] sm:$0xff] %v682
  %s685 = scalar_lea.vmem %s0, 128
  %v686 = vld [vmem:[%s685] sm:$0xff]
  %v687 = vld [vmem:[%s685 + $0x8] sm:$0xff]
  %v688 = vld [vmem:[%s685 + $0x10] sm:$0xff]
  %v689 = vld [vmem:[%s685 + $0x18] sm:$0xff]
  %v690 = vpack.c.bf16 %v682, %v682
  %691 = vmatprep.subr.bf16.mxu0 %v157
  %692 = vmatpush1.bf16.msra.mxu0 %v156
  %693 = vmatprep.subr.bf16.mxu0 %v161
  %694 = vmatpush1.bf16.msra.mxu0 %v160
  %695 = vmatprep.subr.bf16.mxu0 %v165
  %696 = vmatpush1.bf16.msra.mxu0 %v164
  %697 = vmatprep.subr.bf16.mxu0 %v169
  %698 = vmatpush1.bf16.msra.mxu0 %v168
  %699 = vmatprep.subr.bf16.mxu0 %v173
  %700 = vmatpush1.bf16.msra.mxu0 %v172
  %701 = vmatprep.subr.bf16.mxu0 %v177
  %702 = vmatpush1.bf16.msra.mxu0 %v176
  %703 = vmatprep.subr.bf16.mxu0 %v181
  %704 = vmatpush1.bf16.msra.mxu0 %v180
  %705 = vmatprep.subr.bf16.mxu0 %v185
  %706 = vmatpush1.bf16.msra.mxu0 %v184
  %707 = vmatprep.subr.bf16.mxu0 0
  %708 = vmatpush1.bf16.msra.mxu0 0
  %709 = vmatprep.subr.bf16.mxu0 0
  %710 = vmatpush1.bf16.msra.mxu0 0
  %711 = vmatprep.subr.bf16.mxu0 0
  %712 = vmatpush1.bf16.msra.mxu0 0
  %713 = vmatprep.subr.bf16.mxu0 0
  %714 = vmatpush1.bf16.msra.mxu0 0
  %715 = vmatprep.subr.bf16.mxu0 0
  %716 = vmatpush1.bf16.msra.mxu0 0
  %717 = vmatprep.subr.bf16.mxu0 0
  %718 = vmatpush1.bf16.msra.mxu0 0
  %719 = vmatprep.subr.bf16.mxu0 0
  %720 = vmatpush1.bf16.msra.mxu0 0
  %721 = vmatprep.subr.bf16.mxu0 0
  %722 = vmatpush1.bf16.msra.mxu0 0
  %723 = vmatprep.mubr.bf16.mxu0 0
  %724 = vmatmul.mubr.bf16.gmra.mrb[0].mxu0 %v690
  %v725 = vpop.f32.mrb[0].mxu0
  %v726 = vadd.f32 0.0, %v725
  %v727 = vpop.f32.mrb[0].mxu0
  %v728 = vadd.f32 0.0, %v727
  %v729 = vpop.f32.mrb[0].mxu0
  %v730 = vpop.f32.mrb[0].mxu0
  %731 = vdwg.mxu0
  %732 = vmatprep.subr.bf16.mxu0 %v159
  %733 = vmatpush1.bf16.msra.mxu0 %v158
  %734 = vmatprep.subr.bf16.mxu0 %v163
  %735 = vmatpush1.bf16.msra.mxu0 %v162
  %736 = vmatprep.subr.bf16.mxu0 %v167
  %737 = vmatpush1.bf16.msra.mxu0 %v166
  %738 = vmatprep.subr.bf16.mxu0 %v171
  %739 = vmatpush1.bf16.msra.mxu0 %v170
  %740 = vmatprep.subr.bf16.mxu0 %v175
  %741 = vmatpush1.bf16.msra.mxu0 %v174
  %742 = vmatprep.subr.bf16.mxu0 %v179
  %743 = vmatpush1.bf16.msra.mxu0 %v178
  %744 = vmatprep.subr.bf16.mxu0 %v183
  %745 = vmatpush1.bf16.msra.mxu0 %v182
  %746 = vmatprep.subr.bf16.mxu0 %v187
  %747 = vmatpush1.bf16.msra.mxu0 %v186
  %748 = vmatprep.subr.bf16.mxu0 0
  %749 = vmatpush1.bf16.msra.mxu0 0
  %750 = vmatprep.subr.bf16.mxu0 0
  %751 = vmatpush1.bf16.msra.mxu0 0
  %752 = vmatprep.subr.bf16.mxu0 0
  %753 = vmatpush1.bf16.msra.mxu0 0
  %754 = vmatprep.subr.bf16.mxu0 0
  %755 = vmatpush1.bf16.msra.mxu0 0
  %756 = vmatprep.subr.bf16.mxu0 0
  %757 = vmatpush1.bf16.msra.mxu0 0
  %758 = vmatprep.subr.bf16.mxu0 0
  %759 = vmatpush1.bf16.msra.mxu0 0
  %760 = vmatprep.subr.bf16.mxu0 0
  %761 = vmatpush1.bf16.msra.mxu0 0
  %762 = vmatprep.subr.bf16.mxu0 0
  %763 = vmatpush1.bf16.msra.mxu0 0
  %764 = vmatprep.mubr.bf16.mxu0 0
  %765 = vmatmul.mubr.bf16.gmra.mrb[0].mxu0 %v690
  %v766 = vpop.f32.mrb[0].mxu0
  %v767 = vadd.f32 0.0, %v766
  %v768 = vpop.f32.mrb[0].mxu0
  %v769 = vadd.f32 0.0, %v768
  %v770 = vpop.f32.mrb[0].mxu0
  %v771 = vpop.f32.mrb[0].mxu0
  %772 = vdwg.mxu0
  %v773 = vadd.f32 %v686, %v726
  %v774 = vadd.f32 %v687, %v728
  %v775 = vadd.f32 %v688, %v767
  %v776 = vadd.f32 %v689, %v769
  %v777 = vxor.u32 %v773, 2147483648
  %v778 = vmul.f32 %v777, 1.442695
  %v779 = vpow.pop %v778
  %v780 = vadd.f32 %v779, 1.0
  %v781 = vrcp.pop %v780
  %v782 = vmul.f32 1.0, %v781
  %v783 = vxor.u32 %v774, 2147483648
  %v784 = vmul.f32 %v783, 1.442695
  %v785 = vpow.pop %v784
  %v786 = vadd.f32 %v785, 1.0
  %v787 = vrcp.pop %v786
  %v788 = vmul.f32 1.0, %v787
  %v789 = vtanh.pop %v775
  %v790 = vxor.u32 %v776, 2147483648
  %v791 = vmul.f32 %v790, 1.442695
  %v792 = vpow.pop %v791
  %v793 = vadd.f32 %v792, 1.0
  %v794 = vrcp.pop %v793
  %v795 = vmul.f32 1.0, %v794
  %v796 = vmul.f32 %v788, %v680
  %v797 = vmul.f32 %v782, %v789
  %v798 = vadd.f32 %v796, %v797
  %v799 = vtanh.pop %v798
  %v800 = vmul.f32 %v795, %v799
  %s801 = scalar_lea.vmem %s2, 32
  %802 = vst [vmem:[%s801] sm:$0xff] %v800
  %s803 = scalar_lea.vmem %s0, 160
  %v804 = vld [vmem:[%s803] sm:$0xff]
  %v805 = vld [vmem:[%s803 + $0x8] sm:$0xff]
  %v806 = vld [vmem:[%s803 + $0x10] sm:$0xff]
  %v807 = vld [vmem:[%s803 + $0x18] sm:$0xff]
  %v808 = vpack.c.bf16 %v800, %v800
  %809 = vmatprep.subr.bf16.mxu0 %v157
  %810 = vmatpush1.bf16.msra.mxu0 %v156
  %811 = vmatprep.subr.bf16.mxu0 %v161
  %812 = vmatpush1.bf16.msra.mxu0 %v160
  %813 = vmatprep.subr.bf16.mxu0 %v165
  %814 = vmatpush1.bf16.msra.mxu0 %v164
  %815 = vmatprep.subr.bf16.mxu0 %v169
  %816 = vmatpush1.bf16.msra.mxu0 %v168
  %817 = vmatprep.subr.bf16.mxu0 %v173
  %818 = vmatpush1.bf16.msra.mxu0 %v172
  %819 = vmatprep.subr.bf16.mxu0 %v177
  %820 = vmatpush1.bf16.msra.mxu0 %v176
  %821 = vmatprep.subr.bf16.mxu0 %v181
  %822 = vmatpush1.bf16.msra.mxu0 %v180
  %823 = vmatprep.subr.bf16.mxu0 %v185
  %824 = vmatpush1.bf16.msra.mxu0 %v184
  %825 = vmatprep.subr.bf16.mxu0 0
  %826 = vmatpush1.bf16.msra.mxu0 0
  %827 = vmatprep.subr.bf16.mxu0 0
  %828 = vmatpush1.bf16.msra.mxu0 0
  %829 = vmatprep.subr.bf16.mxu0 0
  %830 = vmatpush1.bf16.msra.mxu0 0
  %831 = vmatprep.subr.bf16.mxu0 0
  %832 = vmatpush1.bf16.msra.mxu0 0
  %833 = vmatprep.subr.bf16.mxu0 0
  %834 = vmatpush1.bf16.msra.mxu0 0
  %835 = vmatprep.subr.bf16.mxu0 0
  %836 = vmatpush1.bf16.msra.mxu0 0
  %837 = vmatprep.subr.bf16.mxu0 0
  %838 = vmatpush1.bf16.msra.mxu0 0
  %839 = vmatprep.subr.bf16.mxu0 0
  %840 = vmatpush1.bf16.msra.mxu0 0
  %841 = vmatprep.mubr.bf16.mxu0 0
  %842 = vmatmul.mubr.bf16.gmra.mrb[0].mxu0 %v808
  %v843 = vpop.f32.mrb[0].mxu0
  %v844 = vadd.f32 0.0, %v843
  %v845 = vpop.f32.mrb[0].mxu0
  %v846 = vadd.f32 0.0, %v845
  %v847 = vpop.f32.mrb[0].mxu0
  %v848 = vpop.f32.mrb[0].mxu0
  %849 = vdwg.mxu0
  %850 = vmatprep.subr.bf16.mxu0 %v159
  %851 = vmatpush1.bf16.msra.mxu0 %v158
  %852 = vmatprep.subr.bf16.mxu0 %v163
  %853 = vmatpush1.bf16.msra.mxu0 %v162
  %854 = vmatprep.subr.bf16.mxu0 %v167
  %855 = vmatpush1.bf16.msra.mxu0 %v166
  %856 = vmatprep.subr.bf16.mxu0 %v171
  %857 = vmatpush1.bf16.msra.mxu0 %v170
  %858 = vmatprep.subr.bf16.mxu0 %v175
  %859 = vmatpush1.bf16.msra.mxu0 %v174
  %860 = vmatprep.subr.bf16.mxu0 %v179
  %861 = vmatpush1.bf16.msra.mxu0 %v178
  %862 = vmatprep.subr.bf16.mxu0 %v183
  %863 = vmatpush1.bf16.msra.mxu0 %v182
  %864 = vmatprep.subr.bf16.mxu0 %v187
  %865 = vmatpush1.bf16.msra.mxu0 %v186
  %866 = vmatprep.subr.bf16.mxu0 0
  %867 = vmatpush1.bf16.msra.mxu0 0
  %868 = vmatprep.subr.bf16.mxu0 0
  %869 = vmatpush1.bf16.msra.mxu0 0
  %870 = vmatprep.subr.bf16.mxu0 0
  %871 = vmatpush1.bf16.msra.mxu0 0
  %872 = vmatprep.subr.bf16.mxu0 0
  %873 = vmatpush1.bf16.msra.mxu0 0
  %874 = vmatprep.subr.bf16.mxu0 0
  %875 = vmatpush1.bf16.msra.mxu0 0
  %876 = vmatprep.subr.bf16.mxu0 0
  %877 = vmatpush1.bf16.msra.mxu0 0
  %878 = vmatprep.subr.bf16.mxu0 0
  %879 = vmatpush1.bf16.msra.mxu0 0
  %880 = vmatprep.subr.bf16.mxu0 0
  %881 = vmatpush1.bf16.msra.mxu0 0
  %882 = vmatprep.mubr.bf16.mxu0 0
  %883 = vmatmul.mubr.bf16.gmra.mrb[0].mxu0 %v808
  %v884 = vpop.f32.mrb[0].mxu0
  %v885 = vadd.f32 0.0, %v884
  %v886 = vpop.f32.mrb[0].mxu0
  %v887 = vadd.f32 0.0, %v886
  %v888 = vpop.f32.mrb[0].mxu0
  %v889 = vpop.f32.mrb[0].mxu0
  %890 = vdwg.mxu0
  %v891 = vadd.f32 %v804, %v844
  %v892 = vadd.f32 %v805, %v846
  %v893 = vadd.f32 %v806, %v885
  %v894 = vadd.f32 %v807, %v887
  %v895 = vxor.u32 %v891, 2147483648
  %v896 = vmul.f32 %v895, 1.442695
  %v897 = vpow.pop %v896
  %v898 = vadd.f32 %v897, 1.0
  %v899 = vrcp.pop %v898
  %v900 = vmul.f32 1.0, %v899
  %v901 = vxor.u32 %v892, 2147483648
  %v902 = vmul.f32 %v901, 1.442695
  %v903 = vpow.pop %v902
  %v904 = vadd.f32 %v903, 1.0
  %v905 = vrcp.pop %v904
  %v906 = vmul.f32 1.0, %v905
  %v907 = vtanh.pop %v893
  %v908 = vxor.u32 %v894, 2147483648
  %v909 = vmul.f32 %v908, 1.442695
  %v910 = vpow.pop %v909
  %v911 = vadd.f32 %v910, 1.0
  %v912 = vrcp.pop %v911
  %v913 = vmul.f32 1.0, %v912
  %v914 = vmul.f32 %v906, %v798
  %v915 = vmul.f32 %v900, %v907
  %v916 = vadd.f32 %v914, %v915
  %v917 = vtanh.pop %v916
  %v918 = vmul.f32 %v913, %v917
  %s919 = scalar_lea.vmem %s2, 40
  %920 = vst [vmem:[%s919] sm:$0xff] %v918
  %s921 = scalar_lea.vmem %s0, 192
  %v922 = vld [vmem:[%s921] sm:$0xff]
  %v923 = vld [vmem:[%s921 + $0x8] sm:$0xff]
  %v924 = vld [vmem:[%s921 + $0x10] sm:$0xff]
  %v925 = vld [vmem:[%s921 + $0x18] sm:$0xff]
  %v926 = vpack.c.bf16 %v918, %v918
  %927 = vmatprep.subr.bf16.mxu0 %v157
  %928 = vmatpush1.bf16.msra.mxu0 %v156
  %929 = vmatprep.subr.bf16.mxu0 %v161
  %930 = vmatpush1.bf16.msra.mxu0 %v160
  %931 = vmatprep.subr.bf16.mxu0 %v165
  %932 = vmatpush1.bf16.msra.mxu0 %v164
  %933 = vmatprep.subr.bf16.mxu0 %v169
  %934 = vmatpush1.bf16.msra.mxu0 %v168
  %935 = vmatprep.subr.bf16.mxu0 %v173
  %936 = vmatpush1.bf16.msra.mxu0 %v172
  %937 = vmatprep.subr.bf16.mxu0 %v177
  %938 = vmatpush1.bf16.msra.mxu0 %v176
  %939 = vmatprep.subr.bf16.mxu0 %v181
  %940 = vmatpush1.bf16.msra.mxu0 %v180
  %941 = vmatprep.subr.bf16.mxu0 %v185
  %942 = vmatpush1.bf16.msra.mxu0 %v184
  %943 = vmatprep.subr.bf16.mxu0 0
  %944 = vmatpush1.bf16.msra.mxu0 0
  %945 = vmatprep.subr.bf16.mxu0 0
  %946 = vmatpush1.bf16.msra.mxu0 0
  %947 = vmatprep.subr.bf16.mxu0 0
  %948 = vmatpush1.bf16.msra.mxu0 0
  %949 = vmatprep.subr.bf16.mxu0 0
  %950 = vmatpush1.bf16.msra.mxu0 0
  %951 = vmatprep.subr.bf16.mxu0 0
  %952 = vmatpush1.bf16.msra.mxu0 0
  %953 = vmatprep.subr.bf16.mxu0 0
  %954 = vmatpush1.bf16.msra.mxu0 0
  %955 = vmatprep.subr.bf16.mxu0 0
  %956 = vmatpush1.bf16.msra.mxu0 0
  %957 = vmatprep.subr.bf16.mxu0 0
  %958 = vmatpush1.bf16.msra.mxu0 0
  %959 = vmatprep.mubr.bf16.mxu0 0
  %960 = vmatmul.mubr.bf16.gmra.mrb[0].mxu0 %v926
  %v961 = vpop.f32.mrb[0].mxu0
  %v962 = vadd.f32 0.0, %v961
  %v963 = vpop.f32.mrb[0].mxu0
  %v964 = vadd.f32 0.0, %v963
  %v965 = vpop.f32.mrb[0].mxu0
  %v966 = vpop.f32.mrb[0].mxu0
  %967 = vdwg.mxu0
  %968 = vmatprep.subr.bf16.mxu0 %v159
  %969 = vmatpush1.bf16.msra.mxu0 %v158
  %970 = vmatprep.subr.bf16.mxu0 %v163
  %971 = vmatpush1.bf16.msra.mxu0 %v162
  %972 = vmatprep.subr.bf16.mxu0 %v167
  %973 = vmatpush1.bf16.msra.mxu0 %v166
  %974 = vmatprep.subr.bf16.mxu0 %v171
  %975 = vmatpush1.bf16.msra.mxu0 %v170
  %976 = vmatprep.subr.bf16.mxu0 %v175
  %977 = vmatpush1.bf16.msra.mxu0 %v174
  %978 = vmatprep.subr.bf16.mxu0 %v179
  %979 = vmatpush1.bf16.msra.mxu0 %v178
  %980 = vmatprep.subr.bf16.mxu0 %v183
  %981 = vmatpush1.bf16.msra.mxu0 %v182
  %982 = vmatprep.subr.bf16.mxu0 %v187
  %983 = vmatpush1.bf16.msra.mxu0 %v186
  %984 = vmatprep.subr.bf16.mxu0 0
  %985 = vmatpush1.bf16.msra.mxu0 0
  %986 = vmatprep.subr.bf16.mxu0 0
  %987 = vmatpush1.bf16.msra.mxu0 0
  %988 = vmatprep.subr.bf16.mxu0 0
  %989 = vmatpush1.bf16.msra.mxu0 0
  %990 = vmatprep.subr.bf16.mxu0 0
  %991 = vmatpush1.bf16.msra.mxu0 0
  %992 = vmatprep.subr.bf16.mxu0 0
  %993 = vmatpush1.bf16.msra.mxu0 0
  %994 = vmatprep.subr.bf16.mxu0 0
  %995 = vmatpush1.bf16.msra.mxu0 0
  %996 = vmatprep.subr.bf16.mxu0 0
  %997 = vmatpush1.bf16.msra.mxu0 0
  %998 = vmatprep.subr.bf16.mxu0 0
  %999 = vmatpush1.bf16.msra.mxu0 0
  %1000 = vmatprep.mubr.bf16.mxu0 0
  %1001 = vmatmul.mubr.bf16.gmra.mrb[0].mxu0 %v926
  %v1002 = vpop.f32.mrb[0].mxu0
  %v1003 = vadd.f32 0.0, %v1002
  %v1004 = vpop.f32.mrb[0].mxu0
  %v1005 = vadd.f32 0.0, %v1004
  %v1006 = vpop.f32.mrb[0].mxu0
  %v1007 = vpop.f32.mrb[0].mxu0
  %1008 = vdwg.mxu0
  %v1009 = vadd.f32 %v922, %v962
  %v1010 = vadd.f32 %v923, %v964
  %v1011 = vadd.f32 %v924, %v1003
  %v1012 = vadd.f32 %v925, %v1005
  %v1013 = vxor.u32 %v1009, 2147483648
  %v1014 = vmul.f32 %v1013, 1.442695
  %v1015 = vpow.pop %v1014
  %v1016 = vadd.f32 %v1015, 1.0
  %v1017 = vrcp.pop %v1016
  %v1018 = vmul.f32 1.0, %v1017
  %v1019 = vxor.u32 %v1010, 2147483648
  %v1020 = vmul.f32 %v1019, 1.442695
  %v1021 = vpow.pop %v1020
  %v1022 = vadd.f32 %v1021, 1.0
  %v1023 = vrcp.pop %v1022
  %v1024 = vmul.f32 1.0, %v1023
  %v1025 = vtanh.pop %v1011
  %v1026 = vxor.u32 %v1012, 2147483648
  %v1027 = vmul.f32 %v1026, 1.442695
  %v1028 = vpow.pop %v1027
  %v1029 = vadd.f32 %v1028, 1.0
  %v1030 = vrcp.pop %v1029
  %v1031 = vmul.f32 1.0, %v1030
  %v1032 = vmul.f32 %v1024, %v916
  %v1033 = vmul.f32 %v1018, %v1025
  %v1034 = vadd.f32 %v1032, %v1033
  %v1035 = vtanh.pop %v1034
  %v1036 = vmul.f32 %v1031, %v1035
  %s1037 = scalar_lea.vmem %s2, 48
  %1038 = vst [vmem:[%s1037] sm:$0xff] %v1036
  %s1039 = scalar_lea.vmem %s0, 224
  %v1040 = vld [vmem:[%s1039] sm:$0xff]
  %v1041 = vld [vmem:[%s1039 + $0x8] sm:$0xff]
  %v1042 = vld [vmem:[%s1039 + $0x10] sm:$0xff]
  %v1043 = vld [vmem:[%s1039 + $0x18] sm:$0xff]
  %v1044 = vpack.c.bf16 %v1036, %v1036
  %1045 = vmatprep.subr.bf16.mxu0 %v157
  %1046 = vmatpush1.bf16.msra.mxu0 %v156
  %1047 = vmatprep.subr.bf16.mxu0 %v161
  %1048 = vmatpush1.bf16.msra.mxu0 %v160
  %1049 = vmatprep.subr.bf16.mxu0 %v165
  %1050 = vmatpush1.bf16.msra.mxu0 %v164
  %1051 = vmatprep.subr.bf16.mxu0 %v169
  %1052 = vmatpush1.bf16.msra.mxu0 %v168
  %1053 = vmatprep.subr.bf16.mxu0 %v173
  %1054 = vmatpush1.bf16.msra.mxu0 %v172
  %1055 = vmatprep.subr.bf16.mxu0 %v177
  %1056 = vmatpush1.bf16.msra.mxu0 %v176
  %1057 = vmatprep.subr.bf16.mxu0 %v181
  %1058 = vmatpush1.bf16.msra.mxu0 %v180
  %1059 = vmatprep.subr.bf16.mxu0 %v185
  %1060 = vmatpush1.bf16.msra.mxu0 %v184
  %1061 = vmatprep.subr.bf16.mxu0 0
  %1062 = vmatpush1.bf16.msra.mxu0 0
  %1063 = vmatprep.subr.bf16.mxu0 0
  %1064 = vmatpush1.bf16.msra.mxu0 0
  %1065 = vmatprep.subr.bf16.mxu0 0
  %1066 = vmatpush1.bf16.msra.mxu0 0
  %1067 = vmatprep.subr.bf16.mxu0 0
  %1068 = vmatpush1.bf16.msra.mxu0 0
  %1069 = vmatprep.subr.bf16.mxu0 0
  %1070 = vmatpush1.bf16.msra.mxu0 0
  %1071 = vmatprep.subr.bf16.mxu0 0
  %1072 = vmatpush1.bf16.msra.mxu0 0
  %1073 = vmatprep.subr.bf16.mxu0 0
  %1074 = vmatpush1.bf16.msra.mxu0 0
  %1075 = vmatprep.subr.bf16.mxu0 0
  %1076 = vmatpush1.bf16.msra.mxu0 0
  %1077 = vmatprep.mubr.bf16.mxu0 0
  %1078 = vmatmul.mubr.bf16.gmra.mrb[0].mxu0 %v1044
  %v1079 = vpop.f32.mrb[0].mxu0
  %v1080 = vadd.f32 0.0, %v1079
  %v1081 = vpop.f32.mrb[0].mxu0
  %v1082 = vadd.f32 0.0, %v1081
  %v1083 = vpop.f32.mrb[0].mxu0
  %v1084 = vpop.f32.mrb[0].mxu0
  %1085 = vdwg.mxu0
  %1086 = vmatprep.subr.bf16.mxu0 %v159
  %1087 = vmatpush1.bf16.msra.mxu0 %v158
  %1088 = vmatprep.subr.bf16.mxu0 %v163
  %1089 = vmatpush1.bf16.msra.mxu0 %v162
  %1090 = vmatprep.subr.bf16.mxu0 %v167
  %1091 = vmatpush1.bf16.msra.mxu0 %v166
  %1092 = vmatprep.subr.bf16.mxu0 %v171
  %1093 = vmatpush1.bf16.msra.mxu0 %v170
  %1094 = vmatprep.subr.bf16.mxu0 %v175
  %1095 = vmatpush1.bf16.msra.mxu0 %v174
  %1096 = vmatprep.subr.bf16.mxu0 %v179
  %1097 = vmatpush1.bf16.msra.mxu0 %v178
  %1098 = vmatprep.subr.bf16.mxu0 %v183
  %1099 = vmatpush1.bf16.msra.mxu0 %v182
  %1100 = vmatprep.subr.bf16.mxu0 %v187
  %1101 = vmatpush1.bf16.msra.mxu0 %v186
  %1102 = vmatprep.subr.bf16.mxu0 0
  %1103 = vmatpush1.bf16.msra.mxu0 0
  %1104 = vmatprep.subr.bf16.mxu0 0
  %1105 = vmatpush1.bf16.msra.mxu0 0
  %1106 = vmatprep.subr.bf16.mxu0 0
  %1107 = vmatpush1.bf16.msra.mxu0 0
  %1108 = vmatprep.subr.bf16.mxu0 0
  %1109 = vmatpush1.bf16.msra.mxu0 0
  %1110 = vmatprep.subr.bf16.mxu0 0
  %1111 = vmatpush1.bf16.msra.mxu0 0
  %1112 = vmatprep.subr.bf16.mxu0 0
  %1113 = vmatpush1.bf16.msra.mxu0 0
  %1114 = vmatprep.subr.bf16.mxu0 0
  %1115 = vmatpush1.bf16.msra.mxu0 0
  %1116 = vmatprep.subr.bf16.mxu0 0
  %1117 = vmatpush1.bf16.msra.mxu0 0
  %1118 = vmatprep.mubr.bf16.mxu0 0
  %1119 = vmatmul.mubr.bf16.gmra.mrb[0].mxu0 %v1044
  %v1120 = vpop.f32.mrb[0].mxu0
  %v1121 = vadd.f32 0.0, %v1120
  %v1122 = vpop.f32.mrb[0].mxu0
  %v1123 = vadd.f32 0.0, %v1122
  %v1124 = vpop.f32.mrb[0].mxu0
  %v1125 = vpop.f32.mrb[0].mxu0
  %1126 = vdwg.mxu0
  %v1127 = vadd.f32 %v1040, %v1080
  %v1128 = vadd.f32 %v1041, %v1082
  %v1129 = vadd.f32 %v1042, %v1121
  %v1130 = vadd.f32 %v1043, %v1123
  %v1131 = vxor.u32 %v1127, 2147483648
  %v1132 = vmul.f32 %v1131, 1.442695
  %v1133 = vpow.pop %v1132
  %v1134 = vadd.f32 %v1133, 1.0
  %v1135 = vrcp.pop %v1134
  %v1136 = vmul.f32 1.0, %v1135
  %v1137 = vxor.u32 %v1128, 2147483648
  %v1138 = vmul.f32 %v1137, 1.442695
  %v1139 = vpow.pop %v1138
  %v1140 = vadd.f32 %v1139, 1.0
  %v1141 = vrcp.pop %v1140
  %v1142 = vmul.f32 1.0, %v1141
  %v1143 = vtanh.pop %v1129
  %v1144 = vxor.u32 %v1130, 2147483648
  %v1145 = vmul.f32 %v1144, 1.442695
  %v1146 = vpow.pop %v1145
  %v1147 = vadd.f32 %v1146, 1.0
  %v1148 = vrcp.pop %v1147
  %v1149 = vmul.f32 1.0, %v1148
  %v1150 = vmul.f32 %v1142, %v1034
  %v1151 = vmul.f32 %v1136, %v1143
  %v1152 = vadd.f32 %v1150, %v1151
  %v1153 = vtanh.pop %v1152
  %v1154 = vmul.f32 %v1149, %v1153
  %s1155 = scalar_lea.vmem %s2, 56
  %1156 = vst [vmem:[%s1155] sm:$0xff] %v1154
  %1157 = vst [vmem:[#allocation2] sm:$0xff] %v1154
  %1158 = vst [vmem:[#allocation3] sm:$0xff] %v1152
  // Predicated region
  $region14: #{lstm_model_forward.6} parent=0 // pred_check
    %p1159 = pneg %p15
  $region15: #{lstm_model_forward.6} parent=0 // pred_check_branch
    %1161 = sbr.rel (%p1159) target = $region17
  $region16: #{lstm_model_forward.6} parent=0 // pred_region
    %1162 = vst [vmem:[%s3] sm:$0xff] %v1154
    %1163 = vst [vmem:[%s4] sm:$0xff] %v1152
  $region17: #{lstm_model_forward.6} parent=0 // pred_fallthru
    _
  // Predicated region
  $region18: #{lstm_model_forward.6} parent=0 // pred_check
    _
  $region19: #{lstm_model_forward.6} parent=0 // pred_check_branch
    %1165 = sbr.rel (0) target = $region21
  $region20: #{lstm_model_forward.6} parent=0 // pred_region
    _
  $region21: #{lstm_model_forward.6} parent=0 // pred_fallthru
    _
  // Predicated region
  $region22: #{lstm_model_forward.6} parent=0 // pred_check
    _
  $region23: #{lstm_model_forward.6} parent=0 // pred_check_branch
    %1167 = sbr.rel (0) target = $region25
  $region24: #{lstm_model_forward.6} parent=0 // pred_region
    _
  $region25: #{lstm_model_forward.6} parent=0 // pred_fallthru
    _
  // Predicated region
  $region26: #{lstm_model_forward.6} parent=0 // pred_check
    _
  $region27: #{lstm_model_forward.6} parent=0 // pred_check_branch
    %1169 = sbr.rel (0) target = $region29
  $region28: #{lstm_model_forward.6} parent=0 // pred_region
    _
  $region29: #{lstm_model_forward.6} parent=0 // pred_fallthru
    _
  // Predicated region
  $region30: #{lstm_model_forward.6} parent=0 // pred_check
    _
  $region31: #{lstm_model_forward.6} parent=0 // pred_check_branch
    %1171 = sbr.rel (0) target = $region33
  $region32: #{lstm_model_forward.6} parent=0 // pred_region
    _
  $region33: #{lstm_model_forward.6} parent=0 // pred_fallthru
    _
  // Predicated region
  $region34: #{lstm_model_forward.6} parent=0 // pred_check
    _
  $region35: #{lstm_model_forward.6} parent=0 // pred_check_branch
    %1173 = sbr.rel (0) target = $region37
  $region36: #{lstm_model_forward.6} parent=0 // pred_region
    _
  $region37: #{lstm_model_forward.6} parent=0 // pred_fallthru
    _
  // Predicated region
  $region38: #{lstm_model_forward.6} parent=0 // pred_check
    _
  $region39: #{lstm_model_forward.6} parent=0 // pred_check_branch
    %1175 = sbr.rel (0) target = $region41
  $region40: #{lstm_model_forward.6} parent=0 // pred_region
    _
  $region41: #{lstm_model_forward.6} parent=0 // pred_fallthru
    _

</llo_original>
